<compile_context>
chip_gen: v7x
topology: tpu7x:2x2x1
jax: 0.10.0
libtpu: 0.0.40
codegen_flags: <defaults>
</compile_context>

<pallas_src>
import functools

import jax
import jax.numpy as jnp
from jax.experimental import pallas as pl
from jax.experimental.pallas import tpu as pltpu


def _round_up(x, m):
    return (x + m - 1) // m * m


# ----------------------------- Pallas kernel ---------------------------------
def decoder_attn_kernel(
    emb_ref,    # [B, E]       embedded input tokens
    hid_ref,    # [B, H]       previous decoder hidden state
    enc_ref,    # [B, S, D]    encoder outputs (batch-first), D = 2*enc_hid
    wah_ref,    # [H, H]       attention weight, hidden part (transposed)
    wae_ref,    # [D, H]       attention weight, encoder part (transposed)
    ba_ref,     # [1, H]       attention bias
    v_ref,      # [1, H]       attention scoring vector
    wih_ref,    # [E+D, Gp]    fused GRU W_ih^T (rows: emb then weighted), gate dim padded
    bih_ref,    # [1, Gp]
    whh_ref,    # [H, Gp]      GRU W_hh^T, gate dim padded
    bhh_ref,    # [1, Gp]
    wout_ref,   # [H+D+E, Op]  fused out weight^T (rows: h_new, weighted, emb), O padded
    bout_ref,   # [1, Op]
    pred_ref,   # [B, Op]   (out) padded logits
    hnew_ref,   # [B, H]    (out) new hidden state
):
    B, H = hid_ref.shape
    _, S, D = enc_ref.shape
    emb = emb_ref[...]
    hidden = hid_ref[...]
    enc = enc_ref[...]                                                       # [B, S, D]

    # ---------------- attention (batched over B*S, S on the lane axis) -------
    e_proj = jnp.dot(enc.reshape(B * S, D), wae_ref[...],
                     preferred_element_type=jnp.float32).reshape(B, S, H)    # [B, S, H]
    h_proj = jnp.dot(hidden, wah_ref[...],
                     preferred_element_type=jnp.float32) + ba_ref[...]       # [B, H]
    energy = jnp.tanh(e_proj + h_proj[:, None, :])                           # [B, S, H]
    v3 = jnp.broadcast_to(v_ref[...][None], (B, 1, H))                       # [B, 1, H]
    score = jnp.einsum("bqh,bsh->bqs", v3, energy,
                       preferred_element_type=jnp.float32)                   # [B, 1, S]
    score = score - jnp.max(score, axis=-1, keepdims=True)
    p = jnp.exp(score)
    inv_denom = pl.reciprocal(jnp.sum(p, axis=-1, keepdims=True), approx=True)
    a = p * inv_denom                                                        # [B, 1, S]
    weighted = jnp.einsum("bqs,bsd->bqd", a, enc,
                          preferred_element_type=jnp.float32).reshape(B, D)  # [B, D]

    # ---------------- GRU cell (PyTorch gate order: r, z, n), fused W_ih -----
    x = jnp.concatenate([emb, weighted], axis=1)                             # [B, E+D]
    gi = jnp.dot(x, wih_ref[...], preferred_element_type=jnp.float32) + bih_ref[...]
    gh = jnp.dot(hidden, whh_ref[...], preferred_element_type=jnp.float32) + bhh_ref[...]
    r = jax.nn.sigmoid(gi[:, 0:H] + gh[:, 0:H])
    z = jax.nn.sigmoid(gi[:, H:2 * H] + gh[:, H:2 * H])
    n = jnp.tanh(gi[:, 2 * H:3 * H] + r * gh[:, 2 * H:3 * H])
    h_new = (1.0 - z) * n + z * hidden
    hnew_ref[...] = h_new

    # ---------------- output projection (single fused matmul) ----------------
    xo = jnp.concatenate([h_new, weighted, emb], axis=1)                     # [B, H+D+E]
    pred_ref[...] = (jnp.dot(xo, wout_ref[...], preferred_element_type=jnp.float32)
                     + bout_ref[...])


def _full_spec(shape):
    ndim = len(shape)

    def index_map(i):
        return (0,) * ndim

    return pl.BlockSpec(shape, index_map)


# ----------------------- one-time preprocessing (hoisted) ---------------------
def prepare_decoder_params(params):
    """Transpose / fuse / pad the PyTorch-layout weights once, before decoding."""
    H = params["W_hh"].shape[1]
    O = params["out_w"].shape[0]
    G, Gp = 3 * H, _round_up(3 * H, 128)
    Op = _round_up(O, 128)
    pad_g = ((0, 0), (0, Gp - G))
    pad_o = ((0, 0), (0, Op - O))
    return dict(
        emb_table=params["embedding"],
        wah=params["attn_w"][:, :H].T,                   # [H, H]
        wae=params["attn_w"][:, H:].T,                   # [D, H]
        ba=params["attn_b"][None, :],                    # [1, H]
        v=params["v_w"],                                 # [1, H]
        wih=jnp.pad(params["W_ih"].T, pad_g),            # [E+D, Gp] rows: emb | weighted
        bih=jnp.pad(params["b_ih"][None, :], pad_g),     # [1, Gp]
        whh=jnp.pad(params["W_hh"].T, pad_g),            # [H, Gp]
        bhh=jnp.pad(params["b_hh"][None, :], pad_g),     # [1, Gp]
        wout=jnp.pad(params["out_w"].T, pad_o),          # [H+D+E, Op] rows: h_new|weighted|emb
        bout=jnp.pad(params["out_b"][None, :], pad_o),   # [1, Op]
    )


def prepare_encoder(encoder_outputs):
    """[S, B, D] -> [B, S, D], done once per source sequence (not per decode step)."""
    return jnp.transpose(encoder_outputs, (1, 0, 2))


# ----------------------------- per-step wrapper --------------------------------
@functools.partial(jax.jit, static_argnames=("out_dim",))
def decoder_with_attention_step(prep, input_ids, hidden, enc_btd, *, out_dim):
    """One decoder step. enc_btd: [B, S, 2*enc_hid] (already batch-first)."""
    B, H = hidden.shape
    Op = prep["wout"].shape[1]

    # embedding lookup + (eval-mode) dropout stay in glue
    emb = prep["emb_table"][input_ids]                   # [B, E]

    inputs = (emb, hidden, enc_btd,
              prep["wah"], prep["wae"], prep["ba"], prep["v"],
              prep["wih"], prep["bih"], prep["whh"], prep["bhh"],
              prep["wout"], prep["bout"])

    pred_pad, h_new = pl.pallas_call(
        decoder_attn_kernel,
        out_shape=(
            jax.ShapeDtypeStruct((B, Op), jnp.float32),
            jax.ShapeDtypeStruct((B, H), jnp.float32),
        ),
        grid_spec=pltpu.PrefetchScalarGridSpec(
            num_scalar_prefetch=0,
            grid=(1,),
            in_specs=[_full_spec(x.shape) for x in inputs],
            out_specs=[_full_spec((B, Op)), _full_spec((B, H))],
        ),
        compiler_params=pltpu.CompilerParams(dimension_semantics=("arbitrary",)),
    )(*inputs)
    return pred_pad[:, :out_dim], h_new


# ----------------------------- pure-JAX reference -----------------------------
def reference_step(params, input_ids, hidden, encoder_outputs):
    H = hidden.shape[1]
    emb = params["embedding"][input_ids]
    enc = jnp.transpose(encoder_outputs, (1, 0, 2))            # [B, S, D]
    S = enc.shape[1]
    h_rep = jnp.repeat(hidden[:, None, :], S, axis=1)          # [B, S, H]
    energy = jnp.tanh(jnp.concatenate([h_rep, enc], axis=2) @ params["attn_w"].T
                      + params["attn_b"])
    score = jnp.squeeze(energy @ params["v_w"].T, axis=2)      # [B, S]
    a = jax.nn.softmax(score, axis=1)
    weighted = jnp.einsum("bs,bsd->bd", a, enc)
    x = jnp.concatenate([emb, weighted], axis=1)
    gi = x @ params["W_ih"].T + params["b_ih"]
    gh = hidden @ params["W_hh"].T + params["b_hh"]
    r = jax.nn.sigmoid(gi[:, :H] + gh[:, :H])
    z = jax.nn.sigmoid(gi[:, H:2 * H] + gh[:, H:2 * H])
    n = jnp.tanh(gi[:, 2 * H:] + r * gh[:, 2 * H:])
    h_new = (1.0 - z) * n + z * hidden
    pred = (jnp.concatenate([h_new, weighted, emb], axis=1) @ params["out_w"].T
            + params["out_b"])
    return pred, h_new


# ----------------------------- main -------------------------------------------
if __name__ == "__main__":
    # module hyper-params (small, synthetic)
    OUTPUT_DIM = 64   # vocab size
    EMB_DIM = 16
    ENC_HID = 32
    DEC_HID = 32
    SRC_LEN = 8
    BATCH = 8         # one full sublane tile: same kernel instruction count as B=2
    D = 2 * ENC_HID

    key = jax.random.PRNGKey(0)
    ks = jax.random.split(key, 12)

    def init(k, shape, scale=0.1):
        return (scale * jax.random.normal(k, shape)).astype(jnp.float32)

    params = {
        "embedding": init(ks[0], (OUTPUT_DIM, EMB_DIM)),
        # attention: attn = Linear(2*enc_hid + dec_hid -> dec_hid), v = Linear(dec_hid -> 1, no bias)
        "attn_w": init(ks[1], (DEC_HID, D + DEC_HID)),
        "attn_b": init(ks[2], (DEC_HID,)),
        "v_w": init(ks[3], (1, DEC_HID)),
        # GRU(input = emb + 2*enc_hid, hidden = dec_hid), PyTorch layout, gates (r, z, n)
        "W_ih": init(ks[4], (3 * DEC_HID, EMB_DIM + D)),
        "W_hh": init(ks[5], (3 * DEC_HID, DEC_HID)),
        "b_ih": init(ks[6], (3 * DEC_HID,)),
        "b_hh": init(ks[7], (3 * DEC_HID,)),
        # out = Linear(dec_hid + 2*enc_hid + emb -> output_dim)
        "out_w": init(ks[8], (OUTPUT_DIM, DEC_HID + D + EMB_DIM)),
        "out_b": init(ks[9], (OUTPUT_DIM,)),
    }

    input_ids = jax.random.randint(ks[10], (BATCH,), 0, OUTPUT_DIM)
    hkey, ekey = jax.random.split(ks[11])
    hidden = jax.random.normal(hkey, (BATCH, DEC_HID), dtype=jnp.float32)
    encoder_outputs = jax.random.normal(ekey, (SRC_LEN, BATCH, D), dtype=jnp.float32)

    # one-time preprocessing (outside the per-step path)
    prep = prepare_decoder_params(params)
    enc_btd = prepare_encoder(encoder_outputs)

    pred, h_new = decoder_with_attention_step(prep, input_ids, hidden, enc_btd,
                                              out_dim=OUTPUT_DIM)
    pred, h_new = jax.block_until_ready(pred), jax.block_until_ready(h_new)

    pred_ref, h_ref = reference_step(params, input_ids, hidden, encoder_outputs)
    assert pred.shape == (BATCH, OUTPUT_DIM) and h_new.shape == (BATCH, DEC_HID)
    # tolerance loosened slightly (2e-3) because the softmax denominator uses the
    # EUP approximate reciprocal (pl.reciprocal(..., approx=True)).
    assert jnp.allclose(pred, pred_ref, atol=2e-3, rtol=2e-3), "prediction mismatch"
    assert jnp.allclose(h_new, h_ref, atol=2e-3, rtol=2e-3), "hidden mismatch"

    print("KERNEL_OK")
</pallas_src>

<mosaic_0001>
module attributes {stable_mosaic.version = 11 : i64} {
  func.func @decoder_attn_kernel(%arg0: i32, %arg1: memref<8x16xf32, #tpu.memory_space<vmem>>, %arg2: memref<8x32xf32, #tpu.memory_space<vmem>>, %arg3: memref<8x8x64xf32, #tpu.memory_space<vmem>>, %arg4: memref<32x32xf32, #tpu.memory_space<vmem>>, %arg5: memref<64x32xf32, #tpu.memory_space<vmem>>, %arg6: memref<1x32xf32, #tpu.memory_space<vmem>>, %arg7: memref<1x32xf32, #tpu.memory_space<vmem>>, %arg8: memref<80x128xf32, #tpu.memory_space<vmem>>, %arg9: memref<1x128xf32, #tpu.memory_space<vmem>>, %arg10: memref<32x128xf32, #tpu.memory_space<vmem>>, %arg11: memref<1x128xf32, #tpu.memory_space<vmem>>, %arg12: memref<112x128xf32, #tpu.memory_space<vmem>>, %arg13: memref<1x128xf32, #tpu.memory_space<vmem>>, %arg14: memref<8x128xf32, #tpu.memory_space<vmem>>, %arg15: memref<8x32xf32, #tpu.memory_space<vmem>>) attributes {dimension_semantics = [#tpu.dimension_semantics<arbitrary>], iteration_bounds = array<i64: 1>, scalar_prefetch = 0 : i64, scratch_operands = 0 : i64, tpu.core_type = #tpu.core_type<tc>, window_params = [{pipeline_mode = #tpu.pipeline_mode<synchronous>, transform_indices = @transform_0, window_bounds = array<i64: 8, 16>}, {pipeline_mode = #tpu.pipeline_mode<synchronous>, transform_indices = @transform_1, window_bounds = array<i64: 8, 32>}, {pipeline_mode = #tpu.pipeline_mode<synchronous>, transform_indices = @transform_2, window_bounds = array<i64: 8, 8, 64>}, {pipeline_mode = #tpu.pipeline_mode<synchronous>, transform_indices = @transform_3, window_bounds = array<i64: 32, 32>}, {pipeline_mode = #tpu.pipeline_mode<synchronous>, transform_indices = @transform_4, window_bounds = array<i64: 64, 32>}, {pipeline_mode = #tpu.pipeline_mode<synchronous>, transform_indices = @transform_5, window_bounds = array<i64: 1, 32>}, {pipeline_mode = #tpu.pipeline_mode<synchronous>, transform_indices = @transform_6, window_bounds = array<i64: 1, 32>}, {pipeline_mode = #tpu.pipeline_mode<synchronous>, transform_indices = @transform_7, window_bounds = array<i64: 80, 128>}, {pipeline_mode = #tpu.pipeline_mode<synchronous>, transform_indices = @transform_8, window_bounds = array<i64: 1, 128>}, {pipeline_mode = #tpu.pipeline_mode<synchronous>, transform_indices = @transform_9, window_bounds = array<i64: 32, 128>}, {pipeline_mode = #tpu.pipeline_mode<synchronous>, transform_indices = @transform_10, window_bounds = array<i64: 1, 128>}, {pipeline_mode = #tpu.pipeline_mode<synchronous>, transform_indices = @transform_11, window_bounds = array<i64: 112, 128>}, {pipeline_mode = #tpu.pipeline_mode<synchronous>, transform_indices = @transform_12, window_bounds = array<i64: 1, 128>}, {pipeline_mode = #tpu.pipeline_mode<synchronous>, transform_indices = @transform_13, window_bounds = array<i64: 8, 128>}, {pipeline_mode = #tpu.pipeline_mode<synchronous>, transform_indices = @transform_14, window_bounds = array<i64: 8, 32>}]} {
    %c0 = arith.constant 0 : index
    %c0_0 = arith.constant 0 : index
    %0 = vector.load %arg1[%c0, %c0_0] : memref<8x16xf32, #tpu.memory_space<vmem>>, vector<8x16xf32>
    %c0_1 = arith.constant 0 : index
    %c0_2 = arith.constant 0 : index
    %1 = vector.load %arg2[%c0_1, %c0_2] : memref<8x32xf32, #tpu.memory_space<vmem>>, vector<8x32xf32>
    %c0_3 = arith.constant 0 : index
    %c0_4 = arith.constant 0 : index
    %c0_5 = arith.constant 0 : index
    %2 = vector.load %arg3[%c0_3, %c0_4, %c0_5] : memref<8x8x64xf32, #tpu.memory_space<vmem>>, vector<8x8x64xf32>
    %3 = vector.shape_cast %2 : vector<8x8x64xf32> to vector<64x64xf32>
    %c0_6 = arith.constant 0 : index
    %c0_7 = arith.constant 0 : index
    %4 = vector.load %arg5[%c0_6, %c0_7] : memref<64x32xf32, #tpu.memory_space<vmem>>, vector<64x32xf32>
    %cst = arith.constant dense<0.000000e+00> : vector<64x32xf32>
    %5 = tpu.matmul %3, %4, %cst {dimension_numbers = #tpu.dot_dimension_numbers<[1], [0], [0], [1], [0, 0, 1, 1], [], []>} : vector<64x64xf32>, vector<64x32xf32>, vector<64x32xf32> -> vector<64x32xf32>
    %6 = vector.shape_cast %5 : vector<64x32xf32> to vector<8x8x32xf32>
    %c0_8 = arith.constant 0 : index
    %c0_9 = arith.constant 0 : index
    %7 = vector.load %arg4[%c0_8, %c0_9] : memref<32x32xf32, #tpu.memory_space<vmem>>, vector<32x32xf32>
    %cst_10 = arith.constant dense<0.000000e+00> : vector<8x32xf32>
    %8 = tpu.matmul %1, %7, %cst_10 {dimension_numbers = #tpu.dot_dimension_numbers<[1], [0], [0], [1], [0, 0, 1, 1], [], []>} : vector<8x32xf32>, vector<32x32xf32>, vector<8x32xf32> -> vector<8x32xf32>
    %c0_11 = arith.constant 0 : index
    %c0_12 = arith.constant 0 : index
    %9 = vector.load %arg6[%c0_11, %c0_12] : memref<1x32xf32, #tpu.memory_space<vmem>>, vector<1x32xf32>
    %10 = vector.broadcast %9 : vector<1x32xf32> to vector<8x32xf32>
    %11 = arith.addf %8, %10 : vector<8x32xf32>
    %12 = vector.shape_cast %11 : vector<8x32xf32> to vector<8x1x32xf32>
    %13 = vector.broadcast %12 : vector<8x1x32xf32> to vector<8x8x32xf32>
    %14 = arith.addf %6, %13 : vector<8x8x32xf32>
    %15 = math.tanh %14 : vector<8x8x32xf32>
    %c0_13 = arith.constant 0 : index
    %c0_14 = arith.constant 0 : index
    %16 = vector.load %arg7[%c0_13, %c0_14] : memref<1x32xf32, #tpu.memory_space<vmem>>, vector<1x32xf32>
    %17 = vector.shape_cast %16 : vector<1x32xf32> to vector<1x1x32xf32>
    %18 = vector.shape_cast %17 : vector<1x1x32xf32> to vector<1x1x32xf32>
    %19 = vector.broadcast %18 : vector<1x1x32xf32> to vector<8x1x32xf32>
    "tpu.trace_start"() <{level = 10 : i32, message = "bqh,bsh->bqs"}> : () -> ()
    %cst_15 = arith.constant dense<0.000000e+00> : vector<8x1x8xf32>
    %20 = tpu.matmul %19, %15, %cst_15 {dimension_numbers = #tpu.dot_dimension_numbers<[2], [2], [1], [1], [0, 0, 0, 1, 1, 1], [0], [0]>} : vector<8x1x32xf32>, vector<8x8x32xf32>, vector<8x1x8xf32> -> vector<8x1x8xf32>
    "tpu.trace_stop"() : () -> ()
    %cst_16 = arith.constant dense<0xFF800000> : vector<8x1xf32>
    %21 = vector.multi_reduction <maximumf>, %20, %cst_16 [2] : vector<8x1x8xf32> to vector<8x1xf32>
    %22 = vector.shape_cast %21 : vector<8x1xf32> to vector<8x1x1xf32>
    %23 = vector.broadcast %22 : vector<8x1x1xf32> to vector<8x1x8xf32>
    %24 = arith.subf %20, %23 : vector<8x1x8xf32>
    %25 = math.exp %24 : vector<8x1x8xf32>
    %cst_17 = arith.constant dense<0.000000e+00> : vector<8x1xf32>
    %26 = vector.multi_reduction <add>, %25, %cst_17 [2] : vector<8x1x8xf32> to vector<8x1xf32>
    %27 = vector.shape_cast %26 : vector<8x1xf32> to vector<8x1x1xf32>
    %28 = tpu.reciprocal %27 {approx = true} : vector<8x1x1xf32> -> vector<8x1x1xf32>
    %29 = vector.broadcast %28 : vector<8x1x1xf32> to vector<8x1x8xf32>
    %30 = arith.mulf %25, %29 : vector<8x1x8xf32>
    "tpu.trace_start"() <{level = 10 : i32, message = "bqs,bsd->bqd"}> : () -> ()
    %cst_18 = arith.constant dense<0.000000e+00> : vector<8x1x64xf32>
    %31 = tpu.matmul %30, %2, %cst_18 {dimension_numbers = #tpu.dot_dimension_numbers<[2], [1], [1], [2], [0, 0, 0, 1, 1, 2], [0], [0]>} : vector<8x1x8xf32>, vector<8x8x64xf32>, vector<8x1x64xf32> -> vector<8x1x64xf32>
    "tpu.trace_stop"() : () -> ()
    %32 = vector.shape_cast %31 : vector<8x1x64xf32> to vector<8x64xf32>
    %33 = tpu.concatenate %0, %32 in 1 : vector<8x16xf32>, vector<8x64xf32> -> vector<8x80xf32>
    %c0_19 = arith.constant 0 : index
    %c0_20 = arith.constant 0 : index
    %34 = vector.load %arg8[%c0_19, %c0_20] : memref<80x128xf32, #tpu.memory_space<vmem>>, vector<80x128xf32>
    %cst_21 = arith.constant dense<0.000000e+00> : vector<8x128xf32>
    %35 = tpu.matmul %33, %34, %cst_21 {dimension_numbers = #tpu.dot_dimension_numbers<[1], [0], [0], [1], [0, 0, 1, 1], [], []>} : vector<8x80xf32>, vector<80x128xf32>, vector<8x128xf32> -> vector<8x128xf32>
    %c0_22 = arith.constant 0 : index
    %c0_23 = arith.constant 0 : index
    %36 = vector.load %arg9[%c0_22, %c0_23] : memref<1x128xf32, #tpu.memory_space<vmem>>, vector<1x128xf32>
    %37 = vector.broadcast %36 : vector<1x128xf32> to vector<8x128xf32>
    %38 = arith.addf %35, %37 : vector<8x128xf32>
    %c0_24 = arith.constant 0 : index
    %c0_25 = arith.constant 0 : index
    %39 = vector.load %arg10[%c0_24, %c0_25] : memref<32x128xf32, #tpu.memory_space<vmem>>, vector<32x128xf32>
    %cst_26 = arith.constant dense<0.000000e+00> : vector<8x128xf32>
    %40 = tpu.matmul %1, %39, %cst_26 {dimension_numbers = #tpu.dot_dimension_numbers<[1], [0], [0], [1], [0, 0, 1, 1], [], []>} : vector<8x32xf32>, vector<32x128xf32>, vector<8x128xf32> -> vector<8x128xf32>
    %c0_27 = arith.constant 0 : index
    %c0_28 = arith.constant 0 : index
    %41 = vector.load %arg11[%c0_27, %c0_28] : memref<1x128xf32, #tpu.memory_space<vmem>>, vector<1x128xf32>
    %42 = vector.broadcast %41 : vector<1x128xf32> to vector<8x128xf32>
    %43 = arith.addf %40, %42 : vector<8x128xf32>
    %44 = vector.extract_strided_slice %38 {offsets = [0, 0], sizes = [8, 32], strides = [1, 1]} : vector<8x128xf32> to vector<8x32xf32>
    %45 = vector.extract_strided_slice %43 {offsets = [0, 0], sizes = [8, 32], strides = [1, 1]} : vector<8x128xf32> to vector<8x32xf32>
    %46 = arith.addf %44, %45 : vector<8x32xf32>
    %47 = arith.negf %46 : vector<8x32xf32>
    %48 = math.exp %47 : vector<8x32xf32>
    %cst_29 = arith.constant 1.000000e+00 : f32
    %49 = vector.broadcast %cst_29 : f32 to vector<8x32xf32>
    %50 = arith.addf %49, %48 : vector<8x32xf32>
    %51 = arith.divf %49, %50 : vector<8x32xf32>
    %52 = vector.extract_strided_slice %38 {offsets = [0, 32], sizes = [8, 32], strides = [1, 1]} : vector<8x128xf32> to vector<8x32xf32>
    %53 = vector.extract_strided_slice %43 {offsets = [0, 32], sizes = [8, 32], strides = [1, 1]} : vector<8x128xf32> to vector<8x32xf32>
    %54 = arith.addf %52, %53 : vector<8x32xf32>
    %55 = arith.negf %54 : vector<8x32xf32>
    %56 = math.exp %55 : vector<8x32xf32>
    %cst_30 = arith.constant 1.000000e+00 : f32
    %57 = vector.broadcast %cst_30 : f32 to vector<8x32xf32>
    %58 = arith.addf %57, %56 : vector<8x32xf32>
    %59 = arith.divf %57, %58 : vector<8x32xf32>
    %60 = vector.extract_strided_slice %38 {offsets = [0, 64], sizes = [8, 32], strides = [1, 1]} : vector<8x128xf32> to vector<8x32xf32>
    %61 = vector.extract_strided_slice %43 {offsets = [0, 64], sizes = [8, 32], strides = [1, 1]} : vector<8x128xf32> to vector<8x32xf32>
    %62 = arith.mulf %51, %61 : vector<8x32xf32>
    %63 = arith.addf %60, %62 : vector<8x32xf32>
    %64 = math.tanh %63 : vector<8x32xf32>
    %cst_31 = arith.constant 1.000000e+00 : f32
    %65 = vector.broadcast %cst_31 : f32 to vector<8x32xf32>
    %66 = arith.subf %65, %59 : vector<8x32xf32>
    %67 = arith.mulf %66, %64 : vector<8x32xf32>
    %68 = arith.mulf %59, %1 : vector<8x32xf32>
    %69 = arith.addf %67, %68 : vector<8x32xf32>
    %c0_32 = arith.constant 0 : index
    %c0_33 = arith.constant 0 : index
    %70 = vector.load %arg15[%c0_32, %c0_33] : memref<8x32xf32, #tpu.memory_space<vmem>>, vector<8x32xf32>
    tpu.vector_store %arg15[%c0_32, %c0_33], %69 {strides = array<i32>} : memref<8x32xf32, #tpu.memory_space<vmem>>, vector<8x32xf32>,
    %71 = tpu.concatenate %69, %32, %0 in 1 : vector<8x32xf32>, vector<8x64xf32>, vector<8x16xf32> -> vector<8x112xf32>
    %c0_34 = arith.constant 0 : index
    %c0_35 = arith.constant 0 : index
    %72 = vector.load %arg12[%c0_34, %c0_35] : memref<112x128xf32, #tpu.memory_space<vmem>>, vector<112x128xf32>
    %cst_36 = arith.constant dense<0.000000e+00> : vector<8x128xf32>
    %73 = tpu.matmul %71, %72, %cst_36 {dimension_numbers = #tpu.dot_dimension_numbers<[1], [0], [0], [1], [0, 0, 1, 1], [], []>} : vector<8x112xf32>, vector<112x128xf32>, vector<8x128xf32> -> vector<8x128xf32>
    %c0_37 = arith.constant 0 : index
    %c0_38 = arith.constant 0 : index
    %74 = vector.load %arg13[%c0_37, %c0_38] : memref<1x128xf32, #tpu.memory_space<vmem>>, vector<1x128xf32>
    %75 = vector.broadcast %74 : vector<1x128xf32> to vector<8x128xf32>
    %76 = arith.addf %73, %75 : vector<8x128xf32>
    %c0_39 = arith.constant 0 : index
    %c0_40 = arith.constant 0 : index
    %77 = vector.load %arg14[%c0_39, %c0_40] : memref<8x128xf32, #tpu.memory_space<vmem>>, vector<8x128xf32>
    tpu.vector_store %arg14[%c0_39, %c0_40], %76 {strides = array<i32>} : memref<8x128xf32, #tpu.memory_space<vmem>>, vector<8x128xf32>,
    return
  }
  func.func @transform_0(%arg0: i32) -> (i32, i32) {
    %c0_i32 = arith.constant 0 : i32
    %c0_i32_0 = arith.constant 0 : i32
    %c0_i32_1 = arith.constant 0 : i32
    return %c0_i32, %c0_i32_0 : i32, i32
  }
  func.func @transform_1(%arg0: i32) -> (i32, i32) {
    %c0_i32 = arith.constant 0 : i32
    %c0_i32_0 = arith.constant 0 : i32
    %c0_i32_1 = arith.constant 0 : i32
    return %c0_i32, %c0_i32_0 : i32, i32
  }
  func.func @transform_2(%arg0: i32) -> (i32, i32, i32) {
    %c0_i32 = arith.constant 0 : i32
    %c0_i32_0 = arith.constant 0 : i32
    %c0_i32_1 = arith.constant 0 : i32
    %c0_i32_2 = arith.constant 0 : i32
    return %c0_i32, %c0_i32_0, %c0_i32_1 : i32, i32, i32
  }
  func.func @transform_3(%arg0: i32) -> (i32, i32) {
    %c0_i32 = arith.constant 0 : i32
    %c0_i32_0 = arith.constant 0 : i32
    %c0_i32_1 = arith.constant 0 : i32
    return %c0_i32, %c0_i32_0 : i32, i32
  }
  func.func @transform_4(%arg0: i32) -> (i32, i32) {
    %c0_i32 = arith.constant 0 : i32
    %c0_i32_0 = arith.constant 0 : i32
    %c0_i32_1 = arith.constant 0 : i32
    return %c0_i32, %c0_i32_0 : i32, i32
  }
  func.func @transform_5(%arg0: i32) -> (i32, i32) {
    %c0_i32 = arith.constant 0 : i32
    %c0_i32_0 = arith.constant 0 : i32
    %c0_i32_1 = arith.constant 0 : i32
    return %c0_i32, %c0_i32_0 : i32, i32
  }
  func.func @transform_6(%arg0: i32) -> (i32, i32) {
    %c0_i32 = arith.constant 0 : i32
    %c0_i32_0 = arith.constant 0 : i32
    %c0_i32_1 = arith.constant 0 : i32
    return %c0_i32, %c0_i32_0 : i32, i32
  }
  func.func @transform_7(%arg0: i32) -> (i32, i32) {
    %c0_i32 = arith.constant 0 : i32
    %c0_i32_0 = arith.constant 0 : i32
    %c0_i32_1 = arith.constant 0 : i32
    return %c0_i32, %c0_i32_0 : i32, i32
  }
  func.func @transform_8(%arg0: i32) -> (i32, i32) {
    %c0_i32 = arith.constant 0 : i32
    %c0_i32_0 = arith.constant 0 : i32
    %c0_i32_1 = arith.constant 0 : i32
    return %c0_i32, %c0_i32_0 : i32, i32
  }
  func.func @transform_9(%arg0: i32) -> (i32, i32) {
    %c0_i32 = arith.constant 0 : i32
    %c0_i32_0 = arith.constant 0 : i32
    %c0_i32_1 = arith.constant 0 : i32
    return %c0_i32, %c0_i32_0 : i32, i32
  }
  func.func @transform_10(%arg0: i32) -> (i32, i32) {
    %c0_i32 = arith.constant 0 : i32
    %c0_i32_0 = arith.constant 0 : i32
    %c0_i32_1 = arith.constant 0 : i32
    return %c0_i32, %c0_i32_0 : i32, i32
  }
  func.func @transform_11(%arg0: i32) -> (i32, i32) {
    %c0_i32 = arith.constant 0 : i32
    %c0_i32_0 = arith.constant 0 : i32
    %c0_i32_1 = arith.constant 0 : i32
    return %c0_i32, %c0_i32_0 : i32, i32
  }
  func.func @transform_12(%arg0: i32) -> (i32, i32) {
    %c0_i32 = arith.constant 0 : i32
    %c0_i32_0 = arith.constant 0 : i32
    %c0_i32_1 = arith.constant 0 : i32
    return %c0_i32, %c0_i32_0 : i32, i32
  }
  func.func @transform_13(%arg0: i32) -> (i32, i32) {
    %c0_i32 = arith.constant 0 : i32
    %c0_i32_0 = arith.constant 0 : i32
    %c0_i32_1 = arith.constant 0 : i32
    return %c0_i32, %c0_i32_0 : i32, i32
  }
  func.func @transform_14(%arg0: i32) -> (i32, i32) {
    %c0_i32 = arith.constant 0 : i32
    %c0_i32_0 = arith.constant 0 : i32
    %c0_i32_1 = arith.constant 0 : i32
    return %c0_i32, %c0_i32_0 : i32, i32
  }
}

</mosaic_0001>

<llo_original>
// kernel: decoder_with_attention_step.1
$region0: #{decoder_with_attention_step.1}
  #allocation0 [shape = 'u32[]', space=smem, size = 0x4, offset = 0x4, fixed_abs, tag = 'smem constant byte address 0x4 - core index']
  #allocation1 [shape = 'u32[144,128]{1,0:T(1,128)}', space=vmem, size = 0x12000, scoped, tag = 'internal scratch']
  %s0 = inlined_call_operand.vmem [shape: f32[8,16], index: 0, kind: input, shape index: {}]
  %s1 = inlined_call_operand.vmem [shape: f32[8,32], index: 1, kind: input, shape index: {}]
  %s2 = inlined_call_operand.vmem [shape: f32[8,8,64], index: 2, kind: input, shape index: {}]
  %s3 = inlined_call_operand.vmem [shape: f32[32,32], index: 3, kind: input, shape index: {}]
  %s4 = inlined_call_operand.vmem [shape: f32[64,32], index: 4, kind: input, shape index: {}]
  %s5 = inlined_call_operand.hbm [shape: f32[1,32], index: 5, kind: input, shape index: {}]
  %s6 = inlined_call_operand.hbm [shape: f32[1,32], index: 6, kind: input, shape index: {}]
  %s7 = inlined_call_operand.vmem [shape: f32[80,128], index: 7, kind: input, shape index: {}]
  %s8 = inlined_call_operand.hbm [shape: f32[1,128], index: 8, kind: input, shape index: {}]
  %s9 = inlined_call_operand.hbm [shape: f32[32,128], index: 9, kind: input, shape index: {}]
  %s10 = inlined_call_operand.hbm [shape: f32[1,128], index: 10, kind: input, shape index: {}]
  %s11 = inlined_call_operand.vmem [shape: f32[112,128], index: 11, kind: input, shape index: {}]
  %s12 = inlined_call_operand.hbm [shape: f32[1,128], index: 12, kind: input, shape index: {}]
  %s13 = inlined_call_operand.hbm [shape: f32[8,128], index: 13, kind: output, shape index: {0}]
  %s14 = inlined_call_operand.hbm [shape: f32[8,32], index: 14, kind: output, shape index: {1}]
  %15 = xla_tuple %s13, %s14
  %s16 = sld [smem:[#allocation0]]
  $region94: #{decoder_with_attention_step.1} parent=0
    _
  %s18 = ssub.s32 1, %s16
  %s19 = scalar_select 0, %s18, %s16
  $region1: #{decoder_with_attention_step.1} parent=0
    #allocation2 [shape = 'u8[512]{0}', space=vmem, size = 0x400, scoped, tag = 'input window, operand 5, single buffered']
    #allocation3 [shape = 's32[1]{0}', space=sflag, size = 0x4, scoped, tag = 'scoped memory for decoder_with_attention_step.1']
    #allocation4 [shape = 's32[1]{0}', space=sflag, size = 0x4, scoped, tag = 'scoped memory for decoder_with_attention_step.1']
    #allocation5 [shape = 'u8[512]{0}', space=vmem, size = 0x400, scoped, tag = 'input window, operand 6, single buffered']
    #allocation6 [shape = 's32[1]{0}', space=sflag, size = 0x4, scoped, tag = 'scoped memory for decoder_with_attention_step.1']
    #allocation7 [shape = 'u8[512]{0}', space=vmem, size = 0x400, scoped, tag = 'input window, operand 8, single buffered']
    #allocation8 [shape = 'u8[16384]{0}', space=vmem, size = 0x4000, scoped, tag = 'input window, operand 9, single buffered']
    #allocation9 [shape = 's32[1]{0}', space=sflag, size = 0x4, scoped, tag = 'scoped memory for decoder_with_attention_step.1']
    #allocation10 [shape = 'u8[512]{0}', space=vmem, size = 0x400, scoped, tag = 'input window, operand 10, single buffered']
    #allocation11 [shape = 'u8[512]{0}', space=vmem, size = 0x400, scoped, tag = 'input window, operand 12, single buffered']
    #allocation12 [shape = 's32[1]{0}', space=sflag, size = 0x4, scoped, tag = 'scoped memory for decoder_with_attention_step.1']
    #allocation13 [shape = 'u8[4096]{0}', space=vmem, size = 0x1000, scoped, tag = 'output window, operand 0, single buffered']
    #allocation14 [shape = 'u8[4096]{0}', space=vmem, size = 0x1000, scoped, tag = 'output window, operand 1, single buffered']
    #allocation15 [shape = 's32[1]{0}', space=sflag, size = 0x4, scoped, tag = 'scoped memory for decoder_with_attention_step.1']
    %20 = vsyncpa [#allocation3], 0
    %21 = vsyncpa [#allocation6], 0
    %22 = vsyncpa [#allocation9], 0
    %23 = vsyncpa [#allocation12], 0
    %24 = vsyncpa [#allocation4], 0
    %25 = vsyncpa [#allocation15], 0
    // Predicated region
    $region2: #{decoder_with_attention_step.1} parent=1 // pred_check
      _
    $region3: #{decoder_with_attention_step.1} parent=1 // pred_check_branch
      %27 = sbr.rel (0) target = $region5
    $region4: #{decoder_with_attention_step.1} parent=1 // pred_region
      _
    $region5: #{decoder_with_attention_step.1} parent=1 // pred_fallthru
      _
    // Predicated region
    $region6: #{decoder_with_attention_step.1} parent=1 // pred_check
      _
    $region7: #{decoder_with_attention_step.1} parent=1 // pred_check_branch
      %29 = sbr.rel (0) target = $region9
    $region8: #{decoder_with_attention_step.1} parent=1 // pred_region
      _
    $region9: #{decoder_with_attention_step.1} parent=1 // pred_fallthru
      _
    // Predicated region
    $region10: #{decoder_with_attention_step.1} parent=1 // pred_check
      _
    $region11: #{decoder_with_attention_step.1} parent=1 // pred_check_branch
      %31 = sbr.rel (0) target = $region13
    $region12: #{decoder_with_attention_step.1} parent=1 // pred_region
      _
    $region13: #{decoder_with_attention_step.1} parent=1 // pred_fallthru
      _
    // Predicated region
    $region14: #{decoder_with_attention_step.1} parent=1 // pred_check
      _
    $region15: #{decoder_with_attention_step.1} parent=1 // pred_check_branch
      %33 = sbr.rel (0) target = $region17
    $region16: #{decoder_with_attention_step.1} parent=1 // pred_region
      _
    $region17: #{decoder_with_attention_step.1} parent=1 // pred_fallthru
      _
    // Predicated region
    $region18: #{decoder_with_attention_step.1} parent=1 // pred_check
      _
    $region19: #{decoder_with_attention_step.1} parent=1 // pred_check_branch
      %35 = sbr.rel (0) target = $region21
    $region20: #{decoder_with_attention_step.1} parent=1 // pred_region
      _
    $region21: #{decoder_with_attention_step.1} parent=1 // pred_fallthru
      _
    // Predicated region
    $region22: #{decoder_with_attention_step.1} parent=1 // pred_check
      _
    $region23: #{decoder_with_attention_step.1} parent=1 // pred_check_branch
      %37 = sbr.rel (0) target = $region25
    $region24: #{decoder_with_attention_step.1} parent=1 // pred_region
      %s39 = ssub.s32 16, 16
      %40 = vsyncadd [#allocation3], %s39
      %s42 = sshll.u32 [#allocation2], 4
      %s43 = int_to_ptr.vmem [resolvable:$true] %s42
      %45 = dma.hbm_to_vmem [thread:$0]  %s5, 16, %s43, [#allocation3]
    $region25: #{decoder_with_attention_step.1} parent=1 // pred_fallthru
      _
    // Predicated region
    $region26: #{decoder_with_attention_step.1} parent=1 // pred_check
      _
    $region27: #{decoder_with_attention_step.1} parent=1 // pred_check_branch
      %47 = sbr.rel (0) target = $region29
    $region28: #{decoder_with_attention_step.1} parent=1 // pred_region
      %s49 = ssub.s32 16, 16
      %50 = vsyncadd [#allocation6], %s49
      %s52 = sshll.u32 [#allocation5], 4
      %s53 = int_to_ptr.vmem [resolvable:$true] %s52
      %55 = dma.hbm_to_vmem [thread:$0]  %s6, 16, %s53, [#allocation6]
    $region29: #{decoder_with_attention_step.1} parent=1 // pred_fallthru
      _
    // Predicated region
    $region30: #{decoder_with_attention_step.1} parent=1 // pred_check
      _
    $region31: #{decoder_with_attention_step.1} parent=1 // pred_check_branch
      %57 = sbr.rel (0) target = $region33
    $region32: #{decoder_with_attention_step.1} parent=1 // pred_region
      _
    $region33: #{decoder_with_attention_step.1} parent=1 // pred_fallthru
      _
    // Predicated region
    $region34: #{decoder_with_attention_step.1} parent=1 // pred_check
      _
    $region35: #{decoder_with_attention_step.1} parent=1 // pred_check_branch
      %59 = sbr.rel (0) target = $region37
    $region36: #{decoder_with_attention_step.1} parent=1 // pred_region
      %s61 = ssub.s32 16, 16
      %62 = vsyncadd [#allocation6], %s61
      %s64 = sshll.u32 [#allocation7], 4
      %s65 = int_to_ptr.vmem [resolvable:$true] %s64
      %67 = dma.hbm_to_vmem [thread:$0]  %s8, 16, %s65, [#allocation6]
    $region37: #{decoder_with_attention_step.1} parent=1 // pred_fallthru
      _
    // Predicated region
    $region38: #{decoder_with_attention_step.1} parent=1 // pred_check
      _
    $region39: #{decoder_with_attention_step.1} parent=1 // pred_check_branch
      %69 = sbr.rel (0) target = $region41
    $region40: #{decoder_with_attention_step.1} parent=1 // pred_region
      %s71 = ssub.s32 512, 512
      %72 = vsyncadd [#allocation9], %s71
      %s73 = sshll.u32 [#allocation8], 4
      %s74 = int_to_ptr.vmem [resolvable:$true] %s73
      %79 = dma.hbm_to_vmem [thread:$0]  %s9, 512, %s74, [#allocation9], 128, 128, 8
    $region41: #{decoder_with_attention_step.1} parent=1 // pred_fallthru
      _
    // Predicated region
    $region42: #{decoder_with_attention_step.1} parent=1 // pred_check
      _
    $region43: #{decoder_with_attention_step.1} parent=1 // pred_check_branch
      %81 = sbr.rel (0) target = $region45
    $region44: #{decoder_with_attention_step.1} parent=1 // pred_region
      %s83 = ssub.s32 16, 16
      %84 = vsyncadd [#allocation9], %s83
      %s86 = sshll.u32 [#allocation10], 4
      %s87 = int_to_ptr.vmem [resolvable:$true] %s86
      %89 = dma.hbm_to_vmem [thread:$0]  %s10, 16, %s87, [#allocation9]
    $region45: #{decoder_with_attention_step.1} parent=1 // pred_fallthru
      _
    // Predicated region
    $region46: #{decoder_with_attention_step.1} parent=1 // pred_check
      _
    $region47: #{decoder_with_attention_step.1} parent=1 // pred_check_branch
      %91 = sbr.rel (0) target = $region49
    $region48: #{decoder_with_attention_step.1} parent=1 // pred_region
      _
    $region49: #{decoder_with_attention_step.1} parent=1 // pred_fallthru
      _
    // Predicated region
    $region50: #{decoder_with_attention_step.1} parent=1 // pred_check
      _
    $region51: #{decoder_with_attention_step.1} parent=1 // pred_check_branch
      %93 = sbr.rel (0) target = $region53
    $region52: #{decoder_with_attention_step.1} parent=1 // pred_region
      %s95 = ssub.s32 16, 16
      %96 = vsyncadd [#allocation12], %s95
      %s98 = sshll.u32 [#allocation11], 4
      %s99 = int_to_ptr.vmem [resolvable:$true] %s98
      %101 = dma.hbm_to_vmem [thread:$0]  %s12, 16, %s99, [#allocation12]
    $region53: #{decoder_with_attention_step.1} parent=1 // pred_fallthru
      _
    // Predicated region
    $region54: #{decoder_with_attention_step.1} parent=1 // pred_check
      _
    $region55: #{decoder_with_attention_step.1} parent=1 // pred_check_branch
      %103 = sbr.rel (0) target = $region57
    $region56: #{decoder_with_attention_step.1} parent=1 // pred_region
      %104 = dma.done [#allocation3], 16
    $region57: #{decoder_with_attention_step.1} parent=1 // pred_fallthru
      _
    // Predicated region
    $region58: #{decoder_with_attention_step.1} parent=1 // pred_check
      _
    $region59: #{decoder_with_attention_step.1} parent=1 // pred_check_branch
      %106 = sbr.rel (0) target = $region61
    $region60: #{decoder_with_attention_step.1} parent=1 // pred_region
      %107 = dma.done [#allocation6], 16
    $region61: #{decoder_with_attention_step.1} parent=1 // pred_fallthru
      _
    // Predicated region
    $region62: #{decoder_with_attention_step.1} parent=1 // pred_check
      _
    $region63: #{decoder_with_attention_step.1} parent=1 // pred_check_branch
      %109 = sbr.rel (0) target = $region65
    $region64: #{decoder_with_attention_step.1} parent=1 // pred_region
      %110 = dma.done [#allocation6], 16
    $region65: #{decoder_with_attention_step.1} parent=1 // pred_fallthru
      _
    // Predicated region
    $region66: #{decoder_with_attention_step.1} parent=1 // pred_check
      _
    $region67: #{decoder_with_attention_step.1} parent=1 // pred_check_branch
      %112 = sbr.rel (0) target = $region69
    $region68: #{decoder_with_attention_step.1} parent=1 // pred_region
      %113 = dma.done [#allocation9], 512
    $region69: #{decoder_with_attention_step.1} parent=1 // pred_fallthru
      _
    // Predicated region
    $region70: #{decoder_with_attention_step.1} parent=1 // pred_check
      _
    $region71: #{decoder_with_attention_step.1} parent=1 // pred_check_branch
      %115 = sbr.rel (0) target = $region73
    $region72: #{decoder_with_attention_step.1} parent=1 // pred_region
      %116 = dma.done [#allocation9], 16
    $region73: #{decoder_with_attention_step.1} parent=1 // pred_fallthru
      _
    // Predicated region
    $region74: #{decoder_with_attention_step.1} parent=1 // pred_check
      _
    $region75: #{decoder_with_attention_step.1} parent=1 // pred_check_branch
      %118 = sbr.rel (0) target = $region77
    $region76: #{decoder_with_attention_step.1} parent=1 // pred_region
      %119 = dma.done [#allocation12], 16
    $region77: #{decoder_with_attention_step.1} parent=1 // pred_fallthru
      _
    %v120 = vld [vmem:[%s0] sm:$0xff]
    %v121 = vld [vmem:[%s1] sm:$0xff]
    %v122 = vld [vmem:[%s2] sm:$0xff]
    %v123 = vld [vmem:[%s2 + $0x8] sm:$0xff]
    %v124 = vld [vmem:[%s2 + $0x10] sm:$0xff]
    %v125 = vld [vmem:[%s2 + $0x18] sm:$0xff]
    %v126 = vld [vmem:[%s2 + $0x20] sm:$0xff]
    %v127 = vld [vmem:[%s2 + $0x28] sm:$0xff]
    %v128 = vld [vmem:[%s2 + $0x30] sm:$0xff]
    %v129 = vld [vmem:[%s2 + $0x38] sm:$0xff]
    %v130 = vld [vmem:[%s4] sm:$0xff]
    %v131 = vld [vmem:[%s4 + $0x8] sm:$0xff]
    %v132 = vld [vmem:[%s4 + $0x10] sm:$0xff]
    %v133 = vld [vmem:[%s4 + $0x18] sm:$0xff]
    %v134 = vld [vmem:[%s4 + $0x20] sm:$0xff]
    %v135 = vld [vmem:[%s4 + $0x28] sm:$0xff]
    %v136 = vld [vmem:[%s4 + $0x30] sm:$0xff]
    %v137 = vld [vmem:[%s4 + $0x38] sm:$0xff]
    %vm138 = vcmask 523264
    %v140 = vsel %vm138, %v122, 0
    %v143 = vsel %vm138, %v123, 0
    %v146 = vsel %vm138, %v124, 0
    %v149 = vsel %vm138, %v125, 0
    %v152 = vsel %vm138, %v126, 0
    %v155 = vsel %vm138, %v127, 0
    %v158 = vsel %vm138, %v128, 0
    %v161 = vsel %vm138, %v129, 0
    %163 = vmatprep.subr.mxu0 0.0
    %164 = vmatpush1.msra.mxu0 %v130
    %165 = vmatprep.subr.mxu0 0.0
    %166 = vmatpush1.msra.mxu0 %v131
    %167 = vmatprep.subr.mxu0 0.0
    %168 = vmatpush1.msra.mxu0 %v132
    %169 = vmatprep.subr.mxu0 0.0
    %170 = vmatpush1.msra.mxu0 %v133
    %171 = vmatprep.subr.mxu0 0.0
    %172 = vmatpush1.msra.mxu0 %v134
    %173 = vmatprep.subr.mxu0 0.0
    %174 = vmatpush1.msra.mxu0 %v135
    %175 = vmatprep.subr.mxu0 0.0
    %176 = vmatpush1.msra.mxu0 %v136
    %177 = vmatprep.subr.mxu0 0.0
    %178 = vmatpush1.msra.mxu0 %v137
    %179 = vmatprep.subr.mxu0 0.0
    %180 = vmatpush1.msra.mxu0 0.0
    %181 = vmatprep.subr.mxu0 0.0
    %182 = vmatpush1.msra.mxu0 0.0
    %183 = vmatprep.subr.mxu0 0.0
    %184 = vmatpush1.msra.mxu0 0.0
    %185 = vmatprep.subr.mxu0 0.0
    %186 = vmatpush1.msra.mxu0 0.0
    %187 = vmatprep.subr.mxu0 0.0
    %188 = vmatpush1.msra.mxu0 0.0
    %189 = vmatprep.subr.mxu0 0.0
    %190 = vmatpush1.msra.mxu0 0.0
    %191 = vmatprep.subr.mxu0 0.0
    %192 = vmatpush1.msra.mxu0 0.0
    %193 = vmatprep.subr.mxu0 0.0
    %194 = vmatpush1.msra.mxu0 0.0
    %195 = vmatprep.subr.mxu0 0.0
    %196 = vmatpush1.msra.mxu0 0.0
    %197 = vmatprep.subr.mxu0 0.0
    %198 = vmatpush1.msra.mxu0 0.0
    %199 = vmatprep.subr.mxu0 0.0
    %200 = vmatpush1.msra.mxu0 0.0
    %201 = vmatprep.subr.mxu0 0.0
    %202 = vmatpush1.msra.mxu0 0.0
    %203 = vmatprep.subr.mxu0 0.0
    %204 = vmatpush1.msra.mxu0 0.0
    %205 = vmatprep.subr.mxu0 0.0
    %206 = vmatpush1.msra.mxu0 0.0
    %207 = vmatprep.subr.mxu0 0.0
    %208 = vmatpush1.msra.mxu0 0.0
    %209 = vmatprep.subr.mxu0 0.0
    %210 = vmatpush1.msra.mxu0 0.0
    %211 = vmatprep.subr.mxu0 0.0
    %212 = vmatpush1.msra.mxu0 0.0
    %213 = vmatprep.subr.mxu0 0.0
    %214 = vmatpush1.msra.mxu0 0.0
    %215 = vmatprep.subr.mxu0 0.0
    %216 = vmatpush1.msra.mxu0 0.0
    %217 = vmatprep.subr.mxu0 0.0
    %218 = vmatpush1.msra.mxu0 0.0
    %219 = vmatprep.subr.mxu0 0.0
    %220 = vmatpush1.msra.mxu0 0.0
    %221 = vmatprep.subr.mxu0 0.0
    %222 = vmatpush1.msra.mxu0 0.0
    %223 = vmatprep.subr.mxu0 0.0
    %224 = vmatpush1.msra.mxu0 0.0
    %225 = vmatprep.subr.mxu0 0.0
    %226 = vmatpush1.msra.mxu0 0.0
    %227 = vmatprep.mubr.f32.mxu0 0.0
    %228 = vmatmul.mubr.f32.gmra.mrb[0].mxu0 %v140
    %v229 = vpop.f32.mrb[0].mxu0
    %v230 = vadd.f32 0.0, %v229
    %v231 = vpop.f32.mrb[0].mxu0
    %232 = vmatprep.mubr.f32.mxu0 0.0
    %233 = vmatmul.mubr.f32.gmra.mrb[0].mxu0 %v143
    %v234 = vpop.f32.mrb[0].mxu0
    %v235 = vadd.f32 0.0, %v234
    %v236 = vpop.f32.mrb[0].mxu0
    %237 = vmatprep.mubr.f32.mxu0 0.0
    %238 = vmatmul.mubr.f32.gmra.mrb[0].mxu0 %v146
    %v239 = vpop.f32.mrb[0].mxu0
    %v240 = vadd.f32 0.0, %v239
    %v241 = vpop.f32.mrb[0].mxu0
    %242 = vmatprep.mubr.f32.mxu0 0.0
    %243 = vmatmul.mubr.f32.gmra.mrb[0].mxu0 %v149
    %v244 = vpop.f32.mrb[0].mxu0
    %v245 = vadd.f32 0.0, %v244
    %v246 = vpop.f32.mrb[0].mxu0
    %247 = vmatprep.mubr.f32.mxu0 0.0
    %248 = vmatmul.mubr.f32.gmra.mrb[0].mxu0 %v152
    %v249 = vpop.f32.mrb[0].mxu0
    %v250 = vadd.f32 0.0, %v249
    %v251 = vpop.f32.mrb[0].mxu0
    %252 = vmatprep.mubr.f32.mxu0 0.0
    %253 = vmatmul.mubr.f32.gmra.mrb[0].mxu0 %v155
    %v254 = vpop.f32.mrb[0].mxu0
    %v255 = vadd.f32 0.0, %v254
    %v256 = vpop.f32.mrb[0].mxu0
    %257 = vmatprep.mubr.f32.mxu0 0.0
    %258 = vmatmul.mubr.f32.gmra.mrb[0].mxu0 %v158
    %v259 = vpop.f32.mrb[0].mxu0
    %v260 = vadd.f32 0.0, %v259
    %v261 = vpop.f32.mrb[0].mxu0
    %262 = vmatprep.mubr.f32.mxu0 0.0
    %263 = vmatmul.mubr.f32.gmra.mrb[0].mxu0 %v161
    %v264 = vpop.f32.mrb[0].mxu0
    %v265 = vadd.f32 0.0, %v264
    %v266 = vpop.f32.mrb[0].mxu0
    %267 = vdwg.mxu0
    %v268 = vld [vmem:[%s3] sm:$0xff]
    %v269 = vld [vmem:[%s3 + $0x8] sm:$0xff]
    %v270 = vld [vmem:[%s3 + $0x10] sm:$0xff]
    %v271 = vld [vmem:[%s3 + $0x18] sm:$0xff]
    %v272 = vld [vmem:[#allocation2] sm:$0x1]
    %v274 = vlaneseq
    %v275 = vshrl.u32 %v274, 7
    %v276 = vsub.s32 0, %v275
    %v277 = vrot.slane %v272, %v276
    %vm279 = vcmask 261120
    %v281 = vsel %vm279, %v121, 0
    %283 = vmatprep.subr.mxu0 0.0
    %284 = vmatpush1.msra.mxu0 %v268
    %285 = vmatprep.subr.mxu0 0.0
    %286 = vmatpush1.msra.mxu0 %v269
    %287 = vmatprep.subr.mxu0 0.0
    %288 = vmatpush1.msra.mxu0 %v270
    %289 = vmatprep.subr.mxu0 0.0
    %290 = vmatpush1.msra.mxu0 %v271
    %291 = vmatprep.subr.mxu0 0.0
    %292 = vmatpush1.msra.mxu0 0.0
    %293 = vmatprep.subr.mxu0 0.0
    %294 = vmatpush1.msra.mxu0 0.0
    %295 = vmatprep.subr.mxu0 0.0
    %296 = vmatpush1.msra.mxu0 0.0
    %297 = vmatprep.subr.mxu0 0.0
    %298 = vmatpush1.msra.mxu0 0.0
    %299 = vmatprep.subr.mxu0 0.0
    %300 = vmatpush1.msra.mxu0 0.0
    %301 = vmatprep.subr.mxu0 0.0
    %302 = vmatpush1.msra.mxu0 0.0
    %303 = vmatprep.subr.mxu0 0.0
    %304 = vmatpush1.msra.mxu0 0.0
    %305 = vmatprep.subr.mxu0 0.0
    %306 = vmatpush1.msra.mxu0 0.0
    %307 = vmatprep.subr.mxu0 0.0
    %308 = vmatpush1.msra.mxu0 0.0
    %309 = vmatprep.subr.mxu0 0.0
    %310 = vmatpush1.msra.mxu0 0.0
    %311 = vmatprep.subr.mxu0 0.0
    %312 = vmatpush1.msra.mxu0 0.0
    %313 = vmatprep.subr.mxu0 0.0
    %314 = vmatpush1.msra.mxu0 0.0
    %315 = vmatprep.subr.mxu0 0.0
    %316 = vmatpush1.msra.mxu0 0.0
    %317 = vmatprep.subr.mxu0 0.0
    %318 = vmatpush1.msra.mxu0 0.0
    %319 = vmatprep.subr.mxu0 0.0
    %320 = vmatpush1.msra.mxu0 0.0
    %321 = vmatprep.subr.mxu0 0.0
    %322 = vmatpush1.msra.mxu0 0.0
    %323 = vmatprep.subr.mxu0 0.0
    %324 = vmatpush1.msra.mxu0 0.0
    %325 = vmatprep.subr.mxu0 0.0
    %326 = vmatpush1.msra.mxu0 0.0
    %327 = vmatprep.subr.mxu0 0.0
    %328 = vmatpush1.msra.mxu0 0.0
    %329 = vmatprep.subr.mxu0 0.0
    %330 = vmatpush1.msra.mxu0 0.0
    %331 = vmatprep.subr.mxu0 0.0
    %332 = vmatpush1.msra.mxu0 0.0
    %333 = vmatprep.subr.mxu0 0.0
    %334 = vmatpush1.msra.mxu0 0.0
    %335 = vmatprep.subr.mxu0 0.0
    %336 = vmatpush1.msra.mxu0 0.0
    %337 = vmatprep.subr.mxu0 0.0
    %338 = vmatpush1.msra.mxu0 0.0
    %339 = vmatprep.subr.mxu0 0.0
    %340 = vmatpush1.msra.mxu0 0.0
    %341 = vmatprep.subr.mxu0 0.0
    %342 = vmatpush1.msra.mxu0 0.0
    %343 = vmatprep.subr.mxu0 0.0
    %344 = vmatpush1.msra.mxu0 0.0
    %345 = vmatprep.subr.mxu0 0.0
    %346 = vmatpush1.msra.mxu0 0.0
    %347 = vmatprep.mubr.f32.mxu0 0.0
    %348 = vmatmul.mubr.f32.gmra.mrb[0].mxu0 %v281
    %v349 = vpop.f32.mrb[0].mxu0
    %v350 = vadd.f32 %v277, %v349
    %v351 = vpop.f32.mrb[0].mxu0
    %352 = vdwg.mxu0
    %v354 = vcombine.high %v350, %v350
    %v356 = vunpack.c.l.s4 1966171168
    %v357 = vunpack.c.0.s8 %v356
    %v358 = vlaneseq
    %v359 = vshrl.u32 %v358, 7
    %v360 = vsub.s32 %v357, %v359
    %v361 = vrot.slane %v350, %v360
    %v363 = vunpack.c.l.s4 1966171168
    %v364 = vunpack.c.0.s8 %v363
    %v365 = vlaneseq
    %v366 = vshrl.u32 %v365, 7
    %v367 = vsub.s32 %v364, %v366
    %v368 = vrot.slane %v354, %v367
    %v369 = vcombine.high %v361, %v361
    %v370 = vcombine.high %v368, %v368
    %v372 = vunpack.c.l.s4 1966171168
    %v373 = vunpack.c.0.s8 %v372
    %v374 = vlaneseq
    %v375 = vshrl.u32 %v374, 7
    %v376 = vsub.s32 %v373, %v375
    %v377 = vrot.slane %v361, %v376
    %v379 = vunpack.c.l.s4 1966171168
    %v380 = vunpack.c.0.s8 %v379
    %v381 = vlaneseq
    %v382 = vshrl.u32 %v381, 7
    %v383 = vsub.s32 %v380, %v382
    %v384 = vrot.slane %v368, %v383
    %v386 = vunpack.c.l.s4 1966171168
    %v387 = vunpack.c.0.s8 %v386
    %v388 = vlaneseq
    %v389 = vshrl.u32 %v388, 7
    %v390 = vsub.s32 %v387, %v389
    %v391 = vrot.slane %v369, %v390
    %v393 = vunpack.c.l.s4 1966171168
    %v394 = vunpack.c.0.s8 %v393
    %v395 = vlaneseq
    %v396 = vshrl.u32 %v395, 7
    %v397 = vsub.s32 %v394, %v396
    %v398 = vrot.slane %v370, %v397
    %v399 = vcombine.high %v377, %v377
    %v400 = vcombine.high %v384, %v384
    %v401 = vcombine.high %v391, %v391
    %v402 = vcombine.high %v398, %v398
    %v403 = vlaneseq
    %v404 = vshrl.u32 %v403, 7
    %v405 = vsub.s32 0, %v404
    %v406 = vrot.slane %v377, %v405
    %v407 = vlaneseq
    %v408 = vshrl.u32 %v407, 7
    %v409 = vsub.s32 0, %v408
    %v410 = vrot.slane %v391, %v409
    %v411 = vlaneseq
    %v412 = vshrl.u32 %v411, 7
    %v413 = vsub.s32 0, %v412
    %v414 = vrot.slane %v399, %v413
    %v415 = vlaneseq
    %v416 = vshrl.u32 %v415, 7
    %v417 = vsub.s32 0, %v416
    %v418 = vrot.slane %v401, %v417
    %v419 = vlaneseq
    %v420 = vshrl.u32 %v419, 7
    %v421 = vsub.s32 0, %v420
    %v422 = vrot.slane %v384, %v421
    %v423 = vlaneseq
    %v424 = vshrl.u32 %v423, 7
    %v425 = vsub.s32 0, %v424
    %v426 = vrot.slane %v398, %v425
    %v427 = vlaneseq
    %v428 = vshrl.u32 %v427, 7
    %v429 = vsub.s32 0, %v428
    %v430 = vrot.slane %v400, %v429
    %v431 = vlaneseq
    %v432 = vshrl.u32 %v431, 7
    %v433 = vsub.s32 0, %v432
    %v434 = vrot.slane %v402, %v433
    %v443 = vadd.f32 %v230, %v406
    %v444 = vadd.f32 %v235, %v410
    %v445 = vadd.f32 %v240, %v414
    %v446 = vadd.f32 %v245, %v418
    %v447 = vadd.f32 %v250, %v422
    %v448 = vadd.f32 %v255, %v426
    %v449 = vadd.f32 %v260, %v430
    %v450 = vadd.f32 %v265, %v434
    %v451 = vtanh.pop %v443
    %v452 = vtanh.pop %v444
    %v453 = vtanh.pop %v445
    %v454 = vtanh.pop %v446
    %v455 = vtanh.pop %v447
    %v456 = vtanh.pop %v448
    %v457 = vtanh.pop %v449
    %v458 = vtanh.pop %v450
    %v459 = vld [vmem:[#allocation5] sm:$0x1]
    %v461 = vsel %vm279, %v459, 0
    %v464 = vsel %vm279, %v451, 0
    %466 = vmatprep.subr.mxu0 0.0
    %467 = vmatpush1.xpose.msra.mxu0 %v464
    %468 = vmatprep.subr.mxu0 0.0
    %469 = vmatpush1.xpose.msra.mxu0 0.0
    %470 = vmatprep.subr.mxu0 0.0
    %471 = vmatpush1.xpose.msra.mxu0 0.0
    %472 = vmatprep.subr.mxu0 0.0
    %473 = vmatpush1.xpose.msra.mxu0 0.0
    %474 = vmatprep.subr.mxu0 0.0
    %475 = vmatpush1.xpose.msra.mxu0 0.0
    %476 = vmatprep.subr.mxu0 0.0
    %477 = vmatpush1.xpose.msra.mxu0 0.0
    %478 = vmatprep.subr.mxu0 0.0
    %479 = vmatpush1.xpose.msra.mxu0 0.0
    %480 = vmatprep.subr.mxu0 0.0
    %481 = vmatpush1.xpose.msra.mxu0 0.0
    %482 = vmatprep.subr.mxu0 0.0
    %483 = vmatpush1.xpose.msra.mxu0 0.0
    %484 = vmatprep.subr.mxu0 0.0
    %485 = vmatpush1.xpose.msra.mxu0 0.0
    %486 = vmatprep.subr.mxu0 0.0
    %487 = vmatpush1.xpose.msra.mxu0 0.0
    %488 = vmatprep.subr.mxu0 0.0
    %489 = vmatpush1.xpose.msra.mxu0 0.0
    %490 = vmatprep.subr.mxu0 0.0
    %491 = vmatpush1.xpose.msra.mxu0 0.0
    %492 = vmatprep.subr.mxu0 0.0
    %493 = vmatpush1.xpose.msra.mxu0 0.0
    %494 = vmatprep.subr.mxu0 0.0
    %495 = vmatpush1.xpose.msra.mxu0 0.0
    %496 = vmatprep.subr.mxu0 0.0
    %497 = vmatpush1.xpose.msra.mxu0 0.0
    %498 = vmatprep.subr.mxu0 0.0
    %499 = vmatpush1.xpose.msra.mxu0 0.0
    %500 = vmatprep.subr.mxu0 0.0
    %501 = vmatpush1.xpose.msra.mxu0 0.0
    %502 = vmatprep.subr.mxu0 0.0
    %503 = vmatpush1.xpose.msra.mxu0 0.0
    %504 = vmatprep.subr.mxu0 0.0
    %505 = vmatpush1.xpose.msra.mxu0 0.0
    %506 = vmatprep.subr.mxu0 0.0
    %507 = vmatpush1.xpose.msra.mxu0 0.0
    %508 = vmatprep.subr.mxu0 0.0
    %509 = vmatpush1.xpose.msra.mxu0 0.0
    %510 = vmatprep.subr.mxu0 0.0
    %511 = vmatpush1.xpose.msra.mxu0 0.0
    %512 = vmatprep.subr.mxu0 0.0
    %513 = vmatpush1.xpose.msra.mxu0 0.0
    %514 = vmatprep.subr.mxu0 0.0
    %515 = vmatpush1.xpose.msra.mxu0 0.0
    %516 = vmatprep.subr.mxu0 0.0
    %517 = vmatpush1.xpose.msra.mxu0 0.0
    %518 = vmatprep.subr.mxu0 0.0
    %519 = vmatpush1.xpose.msra.mxu0 0.0
    %520 = vmatprep.subr.mxu0 0.0
    %521 = vmatpush1.xpose.msra.mxu0 0.0
    %522 = vmatprep.subr.mxu0 0.0
    %523 = vmatpush1.xpose.msra.mxu0 0.0
    %524 = vmatprep.subr.mxu0 0.0
    %525 = vmatpush1.xpose.msra.mxu0 0.0
    %526 = vmatprep.subr.mxu0 0.0
    %527 = vmatpush1.xpose.msra.mxu0 0.0
    %528 = vmatprep.subr.mxu0 0.0
    %529 = vmatpush1.xpose.msra.mxu0 0.0
    %530 = vmatprep.mubr.f32.mxu0 0.0
    %531 = vmatmul.mubr.f32.gmra.mrb[0].mxu0 %v461
    %v532 = vpop.f32.mrb[0].mxu0
    %v533 = vadd.f32 0.0, %v532
    %v534 = vpop.f32.mrb[0].mxu0
    %535 = vdwg.mxu0
    %v537 = vsel %vm279, %v452, 0
    %539 = vmatprep.subr.mxu0 0.0
    %540 = vmatpush1.xpose.msra.mxu0 %v537
    %541 = vmatprep.subr.mxu0 0.0
    %542 = vmatpush1.xpose.msra.mxu0 0.0
    %543 = vmatprep.subr.mxu0 0.0
    %544 = vmatpush1.xpose.msra.mxu0 0.0
    %545 = vmatprep.subr.mxu0 0.0
    %546 = vmatpush1.xpose.msra.mxu0 0.0
    %547 = vmatprep.subr.mxu0 0.0
    %548 = vmatpush1.xpose.msra.mxu0 0.0
    %549 = vmatprep.subr.mxu0 0.0
    %550 = vmatpush1.xpose.msra.mxu0 0.0
    %551 = vmatprep.subr.mxu0 0.0
    %552 = vmatpush1.xpose.msra.mxu0 0.0
    %553 = vmatprep.subr.mxu0 0.0
    %554 = vmatpush1.xpose.msra.mxu0 0.0
    %555 = vmatprep.subr.mxu0 0.0
    %556 = vmatpush1.xpose.msra.mxu0 0.0
    %557 = vmatprep.subr.mxu0 0.0
    %558 = vmatpush1.xpose.msra.mxu0 0.0
    %559 = vmatprep.subr.mxu0 0.0
    %560 = vmatpush1.xpose.msra.mxu0 0.0
    %561 = vmatprep.subr.mxu0 0.0
    %562 = vmatpush1.xpose.msra.mxu0 0.0
    %563 = vmatprep.subr.mxu0 0.0
    %564 = vmatpush1.xpose.msra.mxu0 0.0
    %565 = vmatprep.subr.mxu0 0.0
    %566 = vmatpush1.xpose.msra.mxu0 0.0
    %567 = vmatprep.subr.mxu0 0.0
    %568 = vmatpush1.xpose.msra.mxu0 0.0
    %569 = vmatprep.subr.mxu0 0.0
    %570 = vmatpush1.xpose.msra.mxu0 0.0
    %571 = vmatprep.subr.mxu0 0.0
    %572 = vmatpush1.xpose.msra.mxu0 0.0
    %573 = vmatprep.subr.mxu0 0.0
    %574 = vmatpush1.xpose.msra.mxu0 0.0
    %575 = vmatprep.subr.mxu0 0.0
    %576 = vmatpush1.xpose.msra.mxu0 0.0
    %577 = vmatprep.subr.mxu0 0.0
    %578 = vmatpush1.xpose.msra.mxu0 0.0
    %579 = vmatprep.subr.mxu0 0.0
    %580 = vmatpush1.xpose.msra.mxu0 0.0
    %581 = vmatprep.subr.mxu0 0.0
    %582 = vmatpush1.xpose.msra.mxu0 0.0
    %583 = vmatprep.subr.mxu0 0.0
    %584 = vmatpush1.xpose.msra.mxu0 0.0
    %585 = vmatprep.subr.mxu0 0.0
    %586 = vmatpush1.xpose.msra.mxu0 0.0
    %587 = vmatprep.subr.mxu0 0.0
    %588 = vmatpush1.xpose.msra.mxu0 0.0
    %589 = vmatprep.subr.mxu0 0.0
    %590 = vmatpush1.xpose.msra.mxu0 0.0
    %591 = vmatprep.subr.mxu0 0.0
    %592 = vmatpush1.xpose.msra.mxu0 0.0
    %593 = vmatprep.subr.mxu0 0.0
    %594 = vmatpush1.xpose.msra.mxu0 0.0
    %595 = vmatprep.subr.mxu0 0.0
    %596 = vmatpush1.xpose.msra.mxu0 0.0
    %597 = vmatprep.subr.mxu0 0.0
    %598 = vmatpush1.xpose.msra.mxu0 0.0
    %599 = vmatprep.subr.mxu0 0.0
    %600 = vmatpush1.xpose.msra.mxu0 0.0
    %601 = vmatprep.subr.mxu0 0.0
    %602 = vmatpush1.xpose.msra.mxu0 0.0
    %603 = vmatprep.mubr.f32.mxu0 0.0
    %604 = vmatmul.mubr.f32.gmra.mrb[0].mxu0 %v461
    %v605 = vpop.f32.mrb[0].mxu0
    %v606 = vadd.f32 0.0, %v605
    %v607 = vpop.f32.mrb[0].mxu0
    %608 = vdwg.mxu0
    %v610 = vsel %vm279, %v453, 0
    %612 = vmatprep.subr.mxu0 0.0
    %613 = vmatpush1.xpose.msra.mxu0 %v610
    %614 = vmatprep.subr.mxu0 0.0
    %615 = vmatpush1.xpose.msra.mxu0 0.0
    %616 = vmatprep.subr.mxu0 0.0
    %617 = vmatpush1.xpose.msra.mxu0 0.0
    %618 = vmatprep.subr.mxu0 0.0
    %619 = vmatpush1.xpose.msra.mxu0 0.0
    %620 = vmatprep.subr.mxu0 0.0
    %621 = vmatpush1.xpose.msra.mxu0 0.0
    %622 = vmatprep.subr.mxu0 0.0
    %623 = vmatpush1.xpose.msra.mxu0 0.0
    %624 = vmatprep.subr.mxu0 0.0
    %625 = vmatpush1.xpose.msra.mxu0 0.0
    %626 = vmatprep.subr.mxu0 0.0
    %627 = vmatpush1.xpose.msra.mxu0 0.0
    %628 = vmatprep.subr.mxu0 0.0
    %629 = vmatpush1.xpose.msra.mxu0 0.0
    %630 = vmatprep.subr.mxu0 0.0
    %631 = vmatpush1.xpose.msra.mxu0 0.0
    %632 = vmatprep.subr.mxu0 0.0
    %633 = vmatpush1.xpose.msra.mxu0 0.0
    %634 = vmatprep.subr.mxu0 0.0
    %635 = vmatpush1.xpose.msra.mxu0 0.0
    %636 = vmatprep.subr.mxu0 0.0
    %637 = vmatpush1.xpose.msra.mxu0 0.0
    %638 = vmatprep.subr.mxu0 0.0
    %639 = vmatpush1.xpose.msra.mxu0 0.0
    %640 = vmatprep.subr.mxu0 0.0
    %641 = vmatpush1.xpose.msra.mxu0 0.0
    %642 = vmatprep.subr.mxu0 0.0
    %643 = vmatpush1.xpose.msra.mxu0 0.0
    %644 = vmatprep.subr.mxu0 0.0
    %645 = vmatpush1.xpose.msra.mxu0 0.0
    %646 = vmatprep.subr.mxu0 0.0
    %647 = vmatpush1.xpose.msra.mxu0 0.0
    %648 = vmatprep.subr.mxu0 0.0
    %649 = vmatpush1.xpose.msra.mxu0 0.0
    %650 = vmatprep.subr.mxu0 0.0
    %651 = vmatpush1.xpose.msra.mxu0 0.0
    %652 = vmatprep.subr.mxu0 0.0
    %653 = vmatpush1.xpose.msra.mxu0 0.0
    %654 = vmatprep.subr.mxu0 0.0
    %655 = vmatpush1.xpose.msra.mxu0 0.0
    %656 = vmatprep.subr.mxu0 0.0
    %657 = vmatpush1.xpose.msra.mxu0 0.0
    %658 = vmatprep.subr.mxu0 0.0
    %659 = vmatpush1.xpose.msra.mxu0 0.0
    %660 = vmatprep.subr.mxu0 0.0
    %661 = vmatpush1.xpose.msra.mxu0 0.0
    %662 = vmatprep.subr.mxu0 0.0
    %663 = vmatpush1.xpose.msra.mxu0 0.0
    %664 = vmatprep.subr.mxu0 0.0
    %665 = vmatpush1.xpose.msra.mxu0 0.0
    %666 = vmatprep.subr.mxu0 0.0
    %667 = vmatpush1.xpose.msra.mxu0 0.0
    %668 = vmatprep.subr.mxu0 0.0
    %669 = vmatpush1.xpose.msra.mxu0 0.0
    %670 = vmatprep.subr.mxu0 0.0
    %671 = vmatpush1.xpose.msra.mxu0 0.0
    %672 = vmatprep.subr.mxu0 0.0
    %673 = vmatpush1.xpose.msra.mxu0 0.0
    %674 = vmatprep.subr.mxu0 0.0
    %675 = vmatpush1.xpose.msra.mxu0 0.0
    %676 = vmatprep.mubr.f32.mxu0 0.0
    %677 = vmatmul.mubr.f32.gmra.mrb[0].mxu0 %v461
    %v678 = vpop.f32.mrb[0].mxu0
    %v679 = vadd.f32 0.0, %v678
    %v680 = vpop.f32.mrb[0].mxu0
    %681 = vdwg.mxu0
    %v683 = vsel %vm279, %v454, 0
    %685 = vmatprep.subr.mxu0 0.0
    %686 = vmatpush1.xpose.msra.mxu0 %v683
    %687 = vmatprep.subr.mxu0 0.0
    %688 = vmatpush1.xpose.msra.mxu0 0.0
    %689 = vmatprep.subr.mxu0 0.0
    %690 = vmatpush1.xpose.msra.mxu0 0.0
    %691 = vmatprep.subr.mxu0 0.0
    %692 = vmatpush1.xpose.msra.mxu0 0.0
    %693 = vmatprep.subr.mxu0 0.0
    %694 = vmatpush1.xpose.msra.mxu0 0.0
    %695 = vmatprep.subr.mxu0 0.0
    %696 = vmatpush1.xpose.msra.mxu0 0.0
    %697 = vmatprep.subr.mxu0 0.0
    %698 = vmatpush1.xpose.msra.mxu0 0.0
    %699 = vmatprep.subr.mxu0 0.0
    %700 = vmatpush1.xpose.msra.mxu0 0.0
    %701 = vmatprep.subr.mxu0 0.0
    %702 = vmatpush1.xpose.msra.mxu0 0.0
    %703 = vmatprep.subr.mxu0 0.0
    %704 = vmatpush1.xpose.msra.mxu0 0.0
    %705 = vmatprep.subr.mxu0 0.0
    %706 = vmatpush1.xpose.msra.mxu0 0.0
    %707 = vmatprep.subr.mxu0 0.0
    %708 = vmatpush1.xpose.msra.mxu0 0.0
    %709 = vmatprep.subr.mxu0 0.0
    %710 = vmatpush1.xpose.msra.mxu0 0.0
    %711 = vmatprep.subr.mxu0 0.0
    %712 = vmatpush1.xpose.msra.mxu0 0.0
    %713 = vmatprep.subr.mxu0 0.0
    %714 = vmatpush1.xpose.msra.mxu0 0.0
    %715 = vmatprep.subr.mxu0 0.0
    %716 = vmatpush1.xpose.msra.mxu0 0.0
    %717 = vmatprep.subr.mxu0 0.0
    %718 = vmatpush1.xpose.msra.mxu0 0.0
    %719 = vmatprep.subr.mxu0 0.0
    %720 = vmatpush1.xpose.msra.mxu0 0.0
    %721 = vmatprep.subr.mxu0 0.0
    %722 = vmatpush1.xpose.msra.mxu0 0.0
    %723 = vmatprep.subr.mxu0 0.0
    %724 = vmatpush1.xpose.msra.mxu0 0.0
    %725 = vmatprep.subr.mxu0 0.0
    %726 = vmatpush1.xpose.msra.mxu0 0.0
    %727 = vmatprep.subr.mxu0 0.0
    %728 = vmatpush1.xpose.msra.mxu0 0.0
    %729 = vmatprep.subr.mxu0 0.0
    %730 = vmatpush1.xpose.msra.mxu0 0.0
    %731 = vmatprep.subr.mxu0 0.0
    %732 = vmatpush1.xpose.msra.mxu0 0.0
    %733 = vmatprep.subr.mxu0 0.0
    %734 = vmatpush1.xpose.msra.mxu0 0.0
    %735 = vmatprep.subr.mxu0 0.0
    %736 = vmatpush1.xpose.msra.mxu0 0.0
    %737 = vmatprep.subr.mxu0 0.0
    %738 = vmatpush1.xpose.msra.mxu0 0.0
    %739 = vmatprep.subr.mxu0 0.0
    %740 = vmatpush1.xpose.msra.mxu0 0.0
    %741 = vmatprep.subr.mxu0 0.0
    %742 = vmatpush1.xpose.msra.mxu0 0.0
    %743 = vmatprep.subr.mxu0 0.0
    %744 = vmatpush1.xpose.msra.mxu0 0.0
    %745 = vmatprep.subr.mxu0 0.0
    %746 = vmatpush1.xpose.msra.mxu0 0.0
    %747 = vmatprep.subr.mxu0 0.0
    %748 = vmatpush1.xpose.msra.mxu0 0.0
    %749 = vmatprep.mubr.f32.mxu0 0.0
    %750 = vmatmul.mubr.f32.gmra.mrb[0].mxu0 %v461
    %v751 = vpop.f32.mrb[0].mxu0
    %v752 = vadd.f32 0.0, %v751
    %v753 = vpop.f32.mrb[0].mxu0
    %754 = vdwg.mxu0
    %v756 = vsel %vm279, %v455, 0
    %758 = vmatprep.subr.mxu0 0.0
    %759 = vmatpush1.xpose.msra.mxu0 %v756
    %760 = vmatprep.subr.mxu0 0.0
    %761 = vmatpush1.xpose.msra.mxu0 0.0
    %762 = vmatprep.subr.mxu0 0.0
    %763 = vmatpush1.xpose.msra.mxu0 0.0
    %764 = vmatprep.subr.mxu0 0.0
    %765 = vmatpush1.xpose.msra.mxu0 0.0
    %766 = vmatprep.subr.mxu0 0.0
    %767 = vmatpush1.xpose.msra.mxu0 0.0
    %768 = vmatprep.subr.mxu0 0.0
    %769 = vmatpush1.xpose.msra.mxu0 0.0
    %770 = vmatprep.subr.mxu0 0.0
    %771 = vmatpush1.xpose.msra.mxu0 0.0
    %772 = vmatprep.subr.mxu0 0.0
    %773 = vmatpush1.xpose.msra.mxu0 0.0
    %774 = vmatprep.subr.mxu0 0.0
    %775 = vmatpush1.xpose.msra.mxu0 0.0
    %776 = vmatprep.subr.mxu0 0.0
    %777 = vmatpush1.xpose.msra.mxu0 0.0
    %778 = vmatprep.subr.mxu0 0.0
    %779 = vmatpush1.xpose.msra.mxu0 0.0
    %780 = vmatprep.subr.mxu0 0.0
    %781 = vmatpush1.xpose.msra.mxu0 0.0
    %782 = vmatprep.subr.mxu0 0.0
    %783 = vmatpush1.xpose.msra.mxu0 0.0
    %784 = vmatprep.subr.mxu0 0.0
    %785 = vmatpush1.xpose.msra.mxu0 0.0
    %786 = vmatprep.subr.mxu0 0.0
    %787 = vmatpush1.xpose.msra.mxu0 0.0
    %788 = vmatprep.subr.mxu0 0.0
    %789 = vmatpush1.xpose.msra.mxu0 0.0
    %790 = vmatprep.subr.mxu0 0.0
    %791 = vmatpush1.xpose.msra.mxu0 0.0
    %792 = vmatprep.subr.mxu0 0.0
    %793 = vmatpush1.xpose.msra.mxu0 0.0
    %794 = vmatprep.subr.mxu0 0.0
    %795 = vmatpush1.xpose.msra.mxu0 0.0
    %796 = vmatprep.subr.mxu0 0.0
    %797 = vmatpush1.xpose.msra.mxu0 0.0
    %798 = vmatprep.subr.mxu0 0.0
    %799 = vmatpush1.xpose.msra.mxu0 0.0
    %800 = vmatprep.subr.mxu0 0.0
    %801 = vmatpush1.xpose.msra.mxu0 0.0
    %802 = vmatprep.subr.mxu0 0.0
    %803 = vmatpush1.xpose.msra.mxu0 0.0
    %804 = vmatprep.subr.mxu0 0.0
    %805 = vmatpush1.xpose.msra.mxu0 0.0
    %806 = vmatprep.subr.mxu0 0.0
    %807 = vmatpush1.xpose.msra.mxu0 0.0
    %808 = vmatprep.subr.mxu0 0.0
    %809 = vmatpush1.xpose.msra.mxu0 0.0
    %810 = vmatprep.subr.mxu0 0.0
    %811 = vmatpush1.xpose.msra.mxu0 0.0
    %812 = vmatprep.subr.mxu0 0.0
    %813 = vmatpush1.xpose.msra.mxu0 0.0
    %814 = vmatprep.subr.mxu0 0.0
    %815 = vmatpush1.xpose.msra.mxu0 0.0
    %816 = vmatprep.subr.mxu0 0.0
    %817 = vmatpush1.xpose.msra.mxu0 0.0
    %818 = vmatprep.subr.mxu0 0.0
    %819 = vmatpush1.xpose.msra.mxu0 0.0
    %820 = vmatprep.subr.mxu0 0.0
    %821 = vmatpush1.xpose.msra.mxu0 0.0
    %822 = vmatprep.mubr.f32.mxu0 0.0
    %823 = vmatmul.mubr.f32.gmra.mrb[0].mxu0 %v461
    %v824 = vpop.f32.mrb[0].mxu0
    %v825 = vadd.f32 0.0, %v824
    %v826 = vpop.f32.mrb[0].mxu0
    %827 = vdwg.mxu0
    %v829 = vsel %vm279, %v456, 0
    %831 = vmatprep.subr.mxu0 0.0
    %832 = vmatpush1.xpose.msra.mxu0 %v829
    %833 = vmatprep.subr.mxu0 0.0
    %834 = vmatpush1.xpose.msra.mxu0 0.0
    %835 = vmatprep.subr.mxu0 0.0
    %836 = vmatpush1.xpose.msra.mxu0 0.0
    %837 = vmatprep.subr.mxu0 0.0
    %838 = vmatpush1.xpose.msra.mxu0 0.0
    %839 = vmatprep.subr.mxu0 0.0
    %840 = vmatpush1.xpose.msra.mxu0 0.0
    %841 = vmatprep.subr.mxu0 0.0
    %842 = vmatpush1.xpose.msra.mxu0 0.0
    %843 = vmatprep.subr.mxu0 0.0
    %844 = vmatpush1.xpose.msra.mxu0 0.0
    %845 = vmatprep.subr.mxu0 0.0
    %846 = vmatpush1.xpose.msra.mxu0 0.0
    %847 = vmatprep.subr.mxu0 0.0
    %848 = vmatpush1.xpose.msra.mxu0 0.0
    %849 = vmatprep.subr.mxu0 0.0
    %850 = vmatpush1.xpose.msra.mxu0 0.0
    %851 = vmatprep.subr.mxu0 0.0
    %852 = vmatpush1.xpose.msra.mxu0 0.0
    %853 = vmatprep.subr.mxu0 0.0
    %854 = vmatpush1.xpose.msra.mxu0 0.0
    %855 = vmatprep.subr.mxu0 0.0
    %856 = vmatpush1.xpose.msra.mxu0 0.0
    %857 = vmatprep.subr.mxu0 0.0
    %858 = vmatpush1.xpose.msra.mxu0 0.0
    %859 = vmatprep.subr.mxu0 0.0
    %860 = vmatpush1.xpose.msra.mxu0 0.0
    %861 = vmatprep.subr.mxu0 0.0
    %862 = vmatpush1.xpose.msra.mxu0 0.0
    %863 = vmatprep.subr.mxu0 0.0
    %864 = vmatpush1.xpose.msra.mxu0 0.0
    %865 = vmatprep.subr.mxu0 0.0
    %866 = vmatpush1.xpose.msra.mxu0 0.0
    %867 = vmatprep.subr.mxu0 0.0
    %868 = vmatpush1.xpose.msra.mxu0 0.0
    %869 = vmatprep.subr.mxu0 0.0
    %870 = vmatpush1.xpose.msra.mxu0 0.0
    %871 = vmatprep.subr.mxu0 0.0
    %872 = vmatpush1.xpose.msra.mxu0 0.0
    %873 = vmatprep.subr.mxu0 0.0
    %874 = vmatpush1.xpose.msra.mxu0 0.0
    %875 = vmatprep.subr.mxu0 0.0
    %876 = vmatpush1.xpose.msra.mxu0 0.0
    %877 = vmatprep.subr.mxu0 0.0
    %878 = vmatpush1.xpose.msra.mxu0 0.0
    %879 = vmatprep.subr.mxu0 0.0
    %880 = vmatpush1.xpose.msra.mxu0 0.0
    %881 = vmatprep.subr.mxu0 0.0
    %882 = vmatpush1.xpose.msra.mxu0 0.0
    %883 = vmatprep.subr.mxu0 0.0
    %884 = vmatpush1.xpose.msra.mxu0 0.0
    %885 = vmatprep.subr.mxu0 0.0
    %886 = vmatpush1.xpose.msra.mxu0 0.0
    %887 = vmatprep.subr.mxu0 0.0
    %888 = vmatpush1.xpose.msra.mxu0 0.0
    %889 = vmatprep.subr.mxu0 0.0
    %890 = vmatpush1.xpose.msra.mxu0 0.0
    %891 = vmatprep.subr.mxu0 0.0
    %892 = vmatpush1.xpose.msra.mxu0 0.0
    %893 = vmatprep.subr.mxu0 0.0
    %894 = vmatpush1.xpose.msra.mxu0 0.0
    %895 = vmatprep.mubr.f32.mxu0 0.0
    %896 = vmatmul.mubr.f32.gmra.mrb[0].mxu0 %v461
    %v897 = vpop.f32.mrb[0].mxu0
    %v898 = vadd.f32 0.0, %v897
    %v899 = vpop.f32.mrb[0].mxu0
    %900 = vdwg.mxu0
    %v902 = vsel %vm279, %v457, 0
    %904 = vmatprep.subr.mxu0 0.0
    %905 = vmatpush1.xpose.msra.mxu0 %v902
    %906 = vmatprep.subr.mxu0 0.0
    %907 = vmatpush1.xpose.msra.mxu0 0.0
    %908 = vmatprep.subr.mxu0 0.0
    %909 = vmatpush1.xpose.msra.mxu0 0.0
    %910 = vmatprep.subr.mxu0 0.0
    %911 = vmatpush1.xpose.msra.mxu0 0.0
    %912 = vmatprep.subr.mxu0 0.0
    %913 = vmatpush1.xpose.msra.mxu0 0.0
    %914 = vmatprep.subr.mxu0 0.0
    %915 = vmatpush1.xpose.msra.mxu0 0.0
    %916 = vmatprep.subr.mxu0 0.0
    %917 = vmatpush1.xpose.msra.mxu0 0.0
    %918 = vmatprep.subr.mxu0 0.0
    %919 = vmatpush1.xpose.msra.mxu0 0.0
    %920 = vmatprep.subr.mxu0 0.0
    %921 = vmatpush1.xpose.msra.mxu0 0.0
    %922 = vmatprep.subr.mxu0 0.0
    %923 = vmatpush1.xpose.msra.mxu0 0.0
    %924 = vmatprep.subr.mxu0 0.0
    %925 = vmatpush1.xpose.msra.mxu0 0.0
    %926 = vmatprep.subr.mxu0 0.0
    %927 = vmatpush1.xpose.msra.mxu0 0.0
    %928 = vmatprep.subr.mxu0 0.0
    %929 = vmatpush1.xpose.msra.mxu0 0.0
    %930 = vmatprep.subr.mxu0 0.0
    %931 = vmatpush1.xpose.msra.mxu0 0.0
    %932 = vmatprep.subr.mxu0 0.0
    %933 = vmatpush1.xpose.msra.mxu0 0.0
    %934 = vmatprep.subr.mxu0 0.0
    %935 = vmatpush1.xpose.msra.mxu0 0.0
    %936 = vmatprep.subr.mxu0 0.0
    %937 = vmatpush1.xpose.msra.mxu0 0.0
    %938 = vmatprep.subr.mxu0 0.0
    %939 = vmatpush1.xpose.msra.mxu0 0.0
    %940 = vmatprep.subr.mxu0 0.0
    %941 = vmatpush1.xpose.msra.mxu0 0.0
    %942 = vmatprep.subr.mxu0 0.0
    %943 = vmatpush1.xpose.msra.mxu0 0.0
    %944 = vmatprep.subr.mxu0 0.0
    %945 = vmatpush1.xpose.msra.mxu0 0.0
    %946 = vmatprep.subr.mxu0 0.0
    %947 = vmatpush1.xpose.msra.mxu0 0.0
    %948 = vmatprep.subr.mxu0 0.0
    %949 = vmatpush1.xpose.msra.mxu0 0.0
    %950 = vmatprep.subr.mxu0 0.0
    %951 = vmatpush1.xpose.msra.mxu0 0.0
    %952 = vmatprep.subr.mxu0 0.0
    %953 = vmatpush1.xpose.msra.mxu0 0.0
    %954 = vmatprep.subr.mxu0 0.0
    %955 = vmatpush1.xpose.msra.mxu0 0.0
    %956 = vmatprep.subr.mxu0 0.0
    %957 = vmatpush1.xpose.msra.mxu0 0.0
    %958 = vmatprep.subr.mxu0 0.0
    %959 = vmatpush1.xpose.msra.mxu0 0.0
    %960 = vmatprep.subr.mxu0 0.0
    %961 = vmatpush1.xpose.msra.mxu0 0.0
    %962 = vmatprep.subr.mxu0 0.0
    %963 = vmatpush1.xpose.msra.mxu0 0.0
    %964 = vmatprep.subr.mxu0 0.0
    %965 = vmatpush1.xpose.msra.mxu0 0.0
    %966 = vmatprep.subr.mxu0 0.0
    %967 = vmatpush1.xpose.msra.mxu0 0.0
    %968 = vmatprep.mubr.f32.mxu0 0.0
    %969 = vmatmul.mubr.f32.gmra.mrb[0].mxu0 %v461
    %v970 = vpop.f32.mrb[0].mxu0
    %v971 = vadd.f32 0.0, %v970
    %v972 = vpop.f32.mrb[0].mxu0
    %973 = vdwg.mxu0
    %v975 = vsel %vm279, %v458, 0
    %977 = vmatprep.subr.mxu0 0.0
    %978 = vmatpush1.xpose.msra.mxu0 %v975
    %979 = vmatprep.subr.mxu0 0.0
    %980 = vmatpush1.xpose.msra.mxu0 0.0
    %981 = vmatprep.subr.mxu0 0.0
    %982 = vmatpush1.xpose.msra.mxu0 0.0
    %983 = vmatprep.subr.mxu0 0.0
    %984 = vmatpush1.xpose.msra.mxu0 0.0
    %985 = vmatprep.subr.mxu0 0.0
    %986 = vmatpush1.xpose.msra.mxu0 0.0
    %987 = vmatprep.subr.mxu0 0.0
    %988 = vmatpush1.xpose.msra.mxu0 0.0
    %989 = vmatprep.subr.mxu0 0.0
    %990 = vmatpush1.xpose.msra.mxu0 0.0
    %991 = vmatprep.subr.mxu0 0.0
    %992 = vmatpush1.xpose.msra.mxu0 0.0
    %993 = vmatprep.subr.mxu0 0.0
    %994 = vmatpush1.xpose.msra.mxu0 0.0
    %995 = vmatprep.subr.mxu0 0.0
    %996 = vmatpush1.xpose.msra.mxu0 0.0
    %997 = vmatprep.subr.mxu0 0.0
    %998 = vmatpush1.xpose.msra.mxu0 0.0
    %999 = vmatprep.subr.mxu0 0.0
    %1000 = vmatpush1.xpose.msra.mxu0 0.0
    %1001 = vmatprep.subr.mxu0 0.0
    %1002 = vmatpush1.xpose.msra.mxu0 0.0
    %1003 = vmatprep.subr.mxu0 0.0
    %1004 = vmatpush1.xpose.msra.mxu0 0.0
    %1005 = vmatprep.subr.mxu0 0.0
    %1006 = vmatpush1.xpose.msra.mxu0 0.0
    %1007 = vmatprep.subr.mxu0 0.0
    %1008 = vmatpush1.xpose.msra.mxu0 0.0
    %1009 = vmatprep.subr.mxu0 0.0
    %1010 = vmatpush1.xpose.msra.mxu0 0.0
    %1011 = vmatprep.subr.mxu0 0.0
    %1012 = vmatpush1.xpose.msra.mxu0 0.0
    %1013 = vmatprep.subr.mxu0 0.0
    %1014 = vmatpush1.xpose.msra.mxu0 0.0
    %1015 = vmatprep.subr.mxu0 0.0
    %1016 = vmatpush1.xpose.msra.mxu0 0.0
    %1017 = vmatprep.subr.mxu0 0.0
    %1018 = vmatpush1.xpose.msra.mxu0 0.0
    %1019 = vmatprep.subr.mxu0 0.0
    %1020 = vmatpush1.xpose.msra.mxu0 0.0
    %1021 = vmatprep.subr.mxu0 0.0
    %1022 = vmatpush1.xpose.msra.mxu0 0.0
    %1023 = vmatprep.subr.mxu0 0.0
    %1024 = vmatpush1.xpose.msra.mxu0 0.0
    %1025 = vmatprep.subr.mxu0 0.0
    %1026 = vmatpush1.xpose.msra.mxu0 0.0
    %1027 = vmatprep.subr.mxu0 0.0
    %1028 = vmatpush1.xpose.msra.mxu0 0.0
    %1029 = vmatprep.subr.mxu0 0.0
    %1030 = vmatpush1.xpose.msra.mxu0 0.0
    %1031 = vmatprep.subr.mxu0 0.0
    %1032 = vmatpush1.xpose.msra.mxu0 0.0
    %1033 = vmatprep.subr.mxu0 0.0
    %1034 = vmatpush1.xpose.msra.mxu0 0.0
    %1035 = vmatprep.subr.mxu0 0.0
    %1036 = vmatpush1.xpose.msra.mxu0 0.0
    %1037 = vmatprep.subr.mxu0 0.0
    %1038 = vmatpush1.xpose.msra.mxu0 0.0
    %1039 = vmatprep.subr.mxu0 0.0
    %1040 = vmatpush1.xpose.msra.mxu0 0.0
    %1041 = vmatprep.mubr.f32.mxu0 0.0
    %1042 = vmatmul.mubr.f32.gmra.mrb[0].mxu0 %v461
    %v1043 = vpop.f32.mrb[0].mxu0
    %v1044 = vadd.f32 0.0, %v1043
    %v1045 = vpop.f32.mrb[0].mxu0
    %1046 = vdwg.mxu0
    %vm1047 = vcmask 57344
    %v1048 = vsel %vm1047, %v533, -inf
    %1049 = vmax.xlane.f32.xlu0 %v1048
    %v1050 = vpop.xlane.xlu0 %1049
    %v1051 = vsel %vm1047, %v606, -inf
    %1052 = vmax.xlane.f32.xlu0 %v1051
    %v1053 = vpop.xlane.xlu0 %1052
    %v1054 = vsel %vm1047, %v679, -inf
    %1055 = vmax.xlane.f32.xlu0 %v1054
    %v1056 = vpop.xlane.xlu0 %1055
    %v1057 = vsel %vm1047, %v752, -inf
    %1058 = vmax.xlane.f32.xlu0 %v1057
    %v1059 = vpop.xlane.xlu0 %1058
    %v1060 = vsel %vm1047, %v825, -inf
    %1061 = vmax.xlane.f32.xlu0 %v1060
    %v1062 = vpop.xlane.xlu0 %1061
    %v1063 = vsel %vm1047, %v898, -inf
    %1064 = vmax.xlane.f32.xlu0 %v1063
    %v1065 = vpop.xlane.xlu0 %1064
    %v1066 = vsel %vm1047, %v971, -inf
    %1067 = vmax.xlane.f32.xlu0 %v1066
    %v1068 = vpop.xlane.xlu0 %1067
    %v1069 = vsel %vm1047, %v1044, -inf
    %1070 = vmax.xlane.f32.xlu0 %v1069
    %v1071 = vpop.xlane.xlu0 %1070
    %v1072 = vsub.f32 %v533, %v1050
    %v1073 = vsub.f32 %v606, %v1053
    %v1074 = vsub.f32 %v679, %v1056
    %v1075 = vsub.f32 %v752, %v1059
    %v1076 = vsub.f32 %v825, %v1062
    %v1077 = vsub.f32 %v898, %v1065
    %v1078 = vsub.f32 %v971, %v1068
    %v1079 = vsub.f32 %v1044, %v1071
    %v1080 = vmul.f32 %v1072, 1.442695
    %v1081 = vpow.pop %v1080
    %v1082 = vmul.f32 %v1073, 1.442695
    %v1083 = vpow.pop %v1082
    %v1084 = vmul.f32 %v1074, 1.442695
    %v1085 = vpow.pop %v1084
    %v1086 = vmul.f32 %v1075, 1.442695
    %v1087 = vpow.pop %v1086
    %v1088 = vmul.f32 %v1076, 1.442695
    %v1089 = vpow.pop %v1088
    %v1090 = vmul.f32 %v1077, 1.442695
    %v1091 = vpow.pop %v1090
    %v1092 = vmul.f32 %v1078, 1.442695
    %v1093 = vpow.pop %v1092
    %v1094 = vmul.f32 %v1079, 1.442695
    %v1095 = vpow.pop %v1094
    %v1096 = vsel %vm1047, %v1081, 0.0
    %1097 = vadd.xlane.f32.xlu0 %v1096
    %v1098 = vpop.xlane.xlu0 %1097
    %v1099 = vsel %vm1047, %v1083, 0.0
    %1100 = vadd.xlane.f32.xlu0 %v1099
    %v1101 = vpop.xlane.xlu0 %1100
    %v1102 = vsel %vm1047, %v1085, 0.0
    %1103 = vadd.xlane.f32.xlu0 %v1102
    %v1104 = vpop.xlane.xlu0 %1103
    %v1105 = vsel %vm1047, %v1087, 0.0
    %1106 = vadd.xlane.f32.xlu0 %v1105
    %v1107 = vpop.xlane.xlu0 %1106
    %v1108 = vsel %vm1047, %v1089, 0.0
    %1109 = vadd.xlane.f32.xlu0 %v1108
    %v1110 = vpop.xlane.xlu0 %1109
    %v1111 = vsel %vm1047, %v1091, 0.0
    %1112 = vadd.xlane.f32.xlu0 %v1111
    %v1113 = vpop.xlane.xlu0 %1112
    %v1114 = vsel %vm1047, %v1093, 0.0
    %1115 = vadd.xlane.f32.xlu0 %v1114
    %v1116 = vpop.xlane.xlu0 %1115
    %v1117 = vsel %vm1047, %v1095, 0.0
    %1118 = vadd.xlane.f32.xlu0 %v1117
    %v1119 = vpop.xlane.xlu0 %1118
    %v1120 = vrcp.pop %v1098
    %v1121 = vrcp.pop %v1101
    %v1122 = vrcp.pop %v1104
    %v1123 = vrcp.pop %v1107
    %v1124 = vrcp.pop %v1110
    %v1125 = vrcp.pop %v1113
    %v1126 = vrcp.pop %v1116
    %v1127 = vrcp.pop %v1119
    %v1128 = vmul.f32 %v1081, %v1120
    %v1129 = vmul.f32 %v1083, %v1121
    %v1130 = vmul.f32 %v1085, %v1122
    %v1131 = vmul.f32 %v1087, %v1123
    %v1132 = vmul.f32 %v1089, %v1124
    %v1133 = vmul.f32 %v1091, %v1125
    %v1134 = vmul.f32 %v1093, %v1126
    %v1135 = vmul.f32 %v1095, %v1127
    %vm1136 = vcmask 64512
    %v1138 = vsel %vm1136, %v1128, 0
    %1140 = vmatprep.subr.mxu0 0.0
    %1141 = vmatpush1.msra.mxu0 %v122
    %1142 = vmatprep.subr.mxu0 0.0
    %1143 = vmatpush1.msra.mxu0 0.0
    %1144 = vmatprep.subr.mxu0 0.0
    %1145 = vmatpush1.msra.mxu0 0.0
    %1146 = vmatprep.subr.mxu0 0.0
    %1147 = vmatpush1.msra.mxu0 0.0
    %1148 = vmatprep.subr.mxu0 0.0
    %1149 = vmatpush1.msra.mxu0 0.0
    %1150 = vmatprep.subr.mxu0 0.0
    %1151 = vmatpush1.msra.mxu0 0.0
    %1152 = vmatprep.subr.mxu0 0.0
    %1153 = vmatpush1.msra.mxu0 0.0
    %1154 = vmatprep.subr.mxu0 0.0
    %1155 = vmatpush1.msra.mxu0 0.0
    %1156 = vmatprep.subr.mxu0 0.0
    %1157 = vmatpush1.msra.mxu0 0.0
    %1158 = vmatprep.subr.mxu0 0.0
    %1159 = vmatpush1.msra.mxu0 0.0
    %1160 = vmatprep.subr.mxu0 0.0
    %1161 = vmatpush1.msra.mxu0 0.0
    %1162 = vmatprep.subr.mxu0 0.0
    %1163 = vmatpush1.msra.mxu0 0.0
    %1164 = vmatprep.subr.mxu0 0.0
    %1165 = vmatpush1.msra.mxu0 0.0
    %1166 = vmatprep.subr.mxu0 0.0
    %1167 = vmatpush1.msra.mxu0 0.0
    %1168 = vmatprep.subr.mxu0 0.0
    %1169 = vmatpush1.msra.mxu0 0.0
    %1170 = vmatprep.subr.mxu0 0.0
    %1171 = vmatpush1.msra.mxu0 0.0
    %1172 = vmatprep.subr.mxu0 0.0
    %1173 = vmatpush1.msra.mxu0 0.0
    %1174 = vmatprep.subr.mxu0 0.0
    %1175 = vmatpush1.msra.mxu0 0.0
    %1176 = vmatprep.subr.mxu0 0.0
    %1177 = vmatpush1.msra.mxu0 0.0
    %1178 = vmatprep.subr.mxu0 0.0
    %1179 = vmatpush1.msra.mxu0 0.0
    %1180 = vmatprep.subr.mxu0 0.0
    %1181 = vmatpush1.msra.mxu0 0.0
    %1182 = vmatprep.subr.mxu0 0.0
    %1183 = vmatpush1.msra.mxu0 0.0
    %1184 = vmatprep.subr.mxu0 0.0
    %1185 = vmatpush1.msra.mxu0 0.0
    %1186 = vmatprep.subr.mxu0 0.0
    %1187 = vmatpush1.msra.mxu0 0.0
    %1188 = vmatprep.subr.mxu0 0.0
    %1189 = vmatpush1.msra.mxu0 0.0
    %1190 = vmatprep.subr.mxu0 0.0
    %1191 = vmatpush1.msra.mxu0 0.0
    %1192 = vmatprep.subr.mxu0 0.0
    %1193 = vmatpush1.msra.mxu0 0.0
    %1194 = vmatprep.subr.mxu0 0.0
    %1195 = vmatpush1.msra.mxu0 0.0
    %1196 = vmatprep.subr.mxu0 0.0
    %1197 = vmatpush1.msra.mxu0 0.0
    %1198 = vmatprep.subr.mxu0 0.0
    %1199 = vmatpush1.msra.mxu0 0.0
    %1200 = vmatprep.subr.mxu0 0.0
    %1201 = vmatpush1.msra.mxu0 0.0
    %1202 = vmatprep.subr.mxu0 0.0
    %1203 = vmatpush1.msra.mxu0 0.0
    %1204 = vmatprep.mubr.f32.mxu0 0.0
    %1205 = vmatmul.mubr.f32.gmra.mrb[0].mxu0 %v1138
    %v1206 = vpop.f32.mrb[0].mxu0
    %v1207 = vadd.f32 0.0, %v1206
    %v1208 = vpop.f32.mrb[0].mxu0
    %1209 = vdwg.mxu0
    %v1211 = vsel %vm1136, %v1129, 0
    %1213 = vmatprep.subr.mxu0 0.0
    %1214 = vmatpush1.msra.mxu0 %v123
    %1215 = vmatprep.subr.mxu0 0.0
    %1216 = vmatpush1.msra.mxu0 0.0
    %1217 = vmatprep.subr.mxu0 0.0
    %1218 = vmatpush1.msra.mxu0 0.0
    %1219 = vmatprep.subr.mxu0 0.0
    %1220 = vmatpush1.msra.mxu0 0.0
    %1221 = vmatprep.subr.mxu0 0.0
    %1222 = vmatpush1.msra.mxu0 0.0
    %1223 = vmatprep.subr.mxu0 0.0
    %1224 = vmatpush1.msra.mxu0 0.0
    %1225 = vmatprep.subr.mxu0 0.0
    %1226 = vmatpush1.msra.mxu0 0.0
    %1227 = vmatprep.subr.mxu0 0.0
    %1228 = vmatpush1.msra.mxu0 0.0
    %1229 = vmatprep.subr.mxu0 0.0
    %1230 = vmatpush1.msra.mxu0 0.0
    %1231 = vmatprep.subr.mxu0 0.0
    %1232 = vmatpush1.msra.mxu0 0.0
    %1233 = vmatprep.subr.mxu0 0.0
    %1234 = vmatpush1.msra.mxu0 0.0
    %1235 = vmatprep.subr.mxu0 0.0
    %1236 = vmatpush1.msra.mxu0 0.0
    %1237 = vmatprep.subr.mxu0 0.0
    %1238 = vmatpush1.msra.mxu0 0.0
    %1239 = vmatprep.subr.mxu0 0.0
    %1240 = vmatpush1.msra.mxu0 0.0
    %1241 = vmatprep.subr.mxu0 0.0
    %1242 = vmatpush1.msra.mxu0 0.0
    %1243 = vmatprep.subr.mxu0 0.0
    %1244 = vmatpush1.msra.mxu0 0.0
    %1245 = vmatprep.subr.mxu0 0.0
    %1246 = vmatpush1.msra.mxu0 0.0
    %1247 = vmatprep.subr.mxu0 0.0
    %1248 = vmatpush1.msra.mxu0 0.0
    %1249 = vmatprep.subr.mxu0 0.0
    %1250 = vmatpush1.msra.mxu0 0.0
    %1251 = vmatprep.subr.mxu0 0.0
    %1252 = vmatpush1.msra.mxu0 0.0
    %1253 = vmatprep.subr.mxu0 0.0
    %1254 = vmatpush1.msra.mxu0 0.0
    %1255 = vmatprep.subr.mxu0 0.0
    %1256 = vmatpush1.msra.mxu0 0.0
    %1257 = vmatprep.subr.mxu0 0.0
    %1258 = vmatpush1.msra.mxu0 0.0
    %1259 = vmatprep.subr.mxu0 0.0
    %1260 = vmatpush1.msra.mxu0 0.0
    %1261 = vmatprep.subr.mxu0 0.0
    %1262 = vmatpush1.msra.mxu0 0.0
    %1263 = vmatprep.subr.mxu0 0.0
    %1264 = vmatpush1.msra.mxu0 0.0
    %1265 = vmatprep.subr.mxu0 0.0
    %1266 = vmatpush1.msra.mxu0 0.0
    %1267 = vmatprep.subr.mxu0 0.0
    %1268 = vmatpush1.msra.mxu0 0.0
    %1269 = vmatprep.subr.mxu0 0.0
    %1270 = vmatpush1.msra.mxu0 0.0
    %1271 = vmatprep.subr.mxu0 0.0
    %1272 = vmatpush1.msra.mxu0 0.0
    %1273 = vmatprep.subr.mxu0 0.0
    %1274 = vmatpush1.msra.mxu0 0.0
    %1275 = vmatprep.subr.mxu0 0.0
    %1276 = vmatpush1.msra.mxu0 0.0
    %1277 = vmatprep.mubr.f32.mxu0 0.0
    %1278 = vmatmul.mubr.f32.gmra.mrb[0].mxu0 %v1211
    %v1279 = vpop.f32.mrb[0].mxu0
    %v1280 = vadd.f32 0.0, %v1279
    %v1281 = vpop.f32.mrb[0].mxu0
    %1282 = vdwg.mxu0
    %v1284 = vsel %vm1136, %v1130, 0
    %1286 = vmatprep.subr.mxu0 0.0
    %1287 = vmatpush1.msra.mxu0 %v124
    %1288 = vmatprep.subr.mxu0 0.0
    %1289 = vmatpush1.msra.mxu0 0.0
    %1290 = vmatprep.subr.mxu0 0.0
    %1291 = vmatpush1.msra.mxu0 0.0
    %1292 = vmatprep.subr.mxu0 0.0
    %1293 = vmatpush1.msra.mxu0 0.0
    %1294 = vmatprep.subr.mxu0 0.0
    %1295 = vmatpush1.msra.mxu0 0.0
    %1296 = vmatprep.subr.mxu0 0.0
    %1297 = vmatpush1.msra.mxu0 0.0
    %1298 = vmatprep.subr.mxu0 0.0
    %1299 = vmatpush1.msra.mxu0 0.0
    %1300 = vmatprep.subr.mxu0 0.0
    %1301 = vmatpush1.msra.mxu0 0.0
    %1302 = vmatprep.subr.mxu0 0.0
    %1303 = vmatpush1.msra.mxu0 0.0
    %1304 = vmatprep.subr.mxu0 0.0
    %1305 = vmatpush1.msra.mxu0 0.0
    %1306 = vmatprep.subr.mxu0 0.0
    %1307 = vmatpush1.msra.mxu0 0.0
    %1308 = vmatprep.subr.mxu0 0.0
    %1309 = vmatpush1.msra.mxu0 0.0
    %1310 = vmatprep.subr.mxu0 0.0
    %1311 = vmatpush1.msra.mxu0 0.0
    %1312 = vmatprep.subr.mxu0 0.0
    %1313 = vmatpush1.msra.mxu0 0.0
    %1314 = vmatprep.subr.mxu0 0.0
    %1315 = vmatpush1.msra.mxu0 0.0
    %1316 = vmatprep.subr.mxu0 0.0
    %1317 = vmatpush1.msra.mxu0 0.0
    %1318 = vmatprep.subr.mxu0 0.0
    %1319 = vmatpush1.msra.mxu0 0.0
    %1320 = vmatprep.subr.mxu0 0.0
    %1321 = vmatpush1.msra.mxu0 0.0
    %1322 = vmatprep.subr.mxu0 0.0
    %1323 = vmatpush1.msra.mxu0 0.0
    %1324 = vmatprep.subr.mxu0 0.0
    %1325 = vmatpush1.msra.mxu0 0.0
    %1326 = vmatprep.subr.mxu0 0.0
    %1327 = vmatpush1.msra.mxu0 0.0
    %1328 = vmatprep.subr.mxu0 0.0
    %1329 = vmatpush1.msra.mxu0 0.0
    %1330 = vmatprep.subr.mxu0 0.0
    %1331 = vmatpush1.msra.mxu0 0.0
    %1332 = vmatprep.subr.mxu0 0.0
    %1333 = vmatpush1.msra.mxu0 0.0
    %1334 = vmatprep.subr.mxu0 0.0
    %1335 = vmatpush1.msra.mxu0 0.0
    %1336 = vmatprep.subr.mxu0 0.0
    %1337 = vmatpush1.msra.mxu0 0.0
    %1338 = vmatprep.subr.mxu0 0.0
    %1339 = vmatpush1.msra.mxu0 0.0
    %1340 = vmatprep.subr.mxu0 0.0
    %1341 = vmatpush1.msra.mxu0 0.0
    %1342 = vmatprep.subr.mxu0 0.0
    %1343 = vmatpush1.msra.mxu0 0.0
    %1344 = vmatprep.subr.mxu0 0.0
    %1345 = vmatpush1.msra.mxu0 0.0
    %1346 = vmatprep.subr.mxu0 0.0
    %1347 = vmatpush1.msra.mxu0 0.0
    %1348 = vmatprep.subr.mxu0 0.0
    %1349 = vmatpush1.msra.mxu0 0.0
    %1350 = vmatprep.mubr.f32.mxu0 0.0
    %1351 = vmatmul.mubr.f32.gmra.mrb[0].mxu0 %v1284
    %v1352 = vpop.f32.mrb[0].mxu0
    %v1353 = vadd.f32 0.0, %v1352
    %v1354 = vpop.f32.mrb[0].mxu0
    %1355 = vdwg.mxu0
    %v1357 = vsel %vm1136, %v1131, 0
    %1359 = vmatprep.subr.mxu0 0.0
    %1360 = vmatpush1.msra.mxu0 %v125
    %1361 = vmatprep.subr.mxu0 0.0
    %1362 = vmatpush1.msra.mxu0 0.0
    %1363 = vmatprep.subr.mxu0 0.0
    %1364 = vmatpush1.msra.mxu0 0.0
    %1365 = vmatprep.subr.mxu0 0.0
    %1366 = vmatpush1.msra.mxu0 0.0
    %1367 = vmatprep.subr.mxu0 0.0
    %1368 = vmatpush1.msra.mxu0 0.0
    %1369 = vmatprep.subr.mxu0 0.0
    %1370 = vmatpush1.msra.mxu0 0.0
    %1371 = vmatprep.subr.mxu0 0.0
    %1372 = vmatpush1.msra.mxu0 0.0
    %1373 = vmatprep.subr.mxu0 0.0
    %1374 = vmatpush1.msra.mxu0 0.0
    %1375 = vmatprep.subr.mxu0 0.0
    %1376 = vmatpush1.msra.mxu0 0.0
    %1377 = vmatprep.subr.mxu0 0.0
    %1378 = vmatpush1.msra.mxu0 0.0
    %1379 = vmatprep.subr.mxu0 0.0
    %1380 = vmatpush1.msra.mxu0 0.0
    %1381 = vmatprep.subr.mxu0 0.0
    %1382 = vmatpush1.msra.mxu0 0.0
    %1383 = vmatprep.subr.mxu0 0.0
    %1384 = vmatpush1.msra.mxu0 0.0
    %1385 = vmatprep.subr.mxu0 0.0
    %1386 = vmatpush1.msra.mxu0 0.0
    %1387 = vmatprep.subr.mxu0 0.0
    %1388 = vmatpush1.msra.mxu0 0.0
    %1389 = vmatprep.subr.mxu0 0.0
    %1390 = vmatpush1.msra.mxu0 0.0
    %1391 = vmatprep.subr.mxu0 0.0
    %1392 = vmatpush1.msra.mxu0 0.0
    %1393 = vmatprep.subr.mxu0 0.0
    %1394 = vmatpush1.msra.mxu0 0.0
    %1395 = vmatprep.subr.mxu0 0.0
    %1396 = vmatpush1.msra.mxu0 0.0
    %1397 = vmatprep.subr.mxu0 0.0
    %1398 = vmatpush1.msra.mxu0 0.0
    %1399 = vmatprep.subr.mxu0 0.0
    %1400 = vmatpush1.msra.mxu0 0.0
    %1401 = vmatprep.subr.mxu0 0.0
    %1402 = vmatpush1.msra.mxu0 0.0
    %1403 = vmatprep.subr.mxu0 0.0
    %1404 = vmatpush1.msra.mxu0 0.0
    %1405 = vmatprep.subr.mxu0 0.0
    %1406 = vmatpush1.msra.mxu0 0.0
    %1407 = vmatprep.subr.mxu0 0.0
    %1408 = vmatpush1.msra.mxu0 0.0
    %1409 = vmatprep.subr.mxu0 0.0
    %1410 = vmatpush1.msra.mxu0 0.0
    %1411 = vmatprep.subr.mxu0 0.0
    %1412 = vmatpush1.msra.mxu0 0.0
    %1413 = vmatprep.subr.mxu0 0.0
    %1414 = vmatpush1.msra.mxu0 0.0
    %1415 = vmatprep.subr.mxu0 0.0
    %1416 = vmatpush1.msra.mxu0 0.0
    %1417 = vmatprep.subr.mxu0 0.0
    %1418 = vmatpush1.msra.mxu0 0.0
    %1419 = vmatprep.subr.mxu0 0.0
    %1420 = vmatpush1.msra.mxu0 0.0
    %1421 = vmatprep.subr.mxu0 0.0
    %1422 = vmatpush1.msra.mxu0 0.0
    %1423 = vmatprep.mubr.f32.mxu0 0.0
    %1424 = vmatmul.mubr.f32.gmra.mrb[0].mxu0 %v1357
    %v1425 = vpop.f32.mrb[0].mxu0
    %v1426 = vadd.f32 0.0, %v1425
    %v1427 = vpop.f32.mrb[0].mxu0
    %1428 = vdwg.mxu0
    %v1430 = vsel %vm1136, %v1132, 0
    %1432 = vmatprep.subr.mxu0 0.0
    %1433 = vmatpush1.msra.mxu0 %v126
    %1434 = vmatprep.subr.mxu0 0.0
    %1435 = vmatpush1.msra.mxu0 0.0
    %1436 = vmatprep.subr.mxu0 0.0
    %1437 = vmatpush1.msra.mxu0 0.0
    %1438 = vmatprep.subr.mxu0 0.0
    %1439 = vmatpush1.msra.mxu0 0.0
    %1440 = vmatprep.subr.mxu0 0.0
    %1441 = vmatpush1.msra.mxu0 0.0
    %1442 = vmatprep.subr.mxu0 0.0
    %1443 = vmatpush1.msra.mxu0 0.0
    %1444 = vmatprep.subr.mxu0 0.0
    %1445 = vmatpush1.msra.mxu0 0.0
    %1446 = vmatprep.subr.mxu0 0.0
    %1447 = vmatpush1.msra.mxu0 0.0
    %1448 = vmatprep.subr.mxu0 0.0
    %1449 = vmatpush1.msra.mxu0 0.0
    %1450 = vmatprep.subr.mxu0 0.0
    %1451 = vmatpush1.msra.mxu0 0.0
    %1452 = vmatprep.subr.mxu0 0.0
    %1453 = vmatpush1.msra.mxu0 0.0
    %1454 = vmatprep.subr.mxu0 0.0
    %1455 = vmatpush1.msra.mxu0 0.0
    %1456 = vmatprep.subr.mxu0 0.0
    %1457 = vmatpush1.msra.mxu0 0.0
    %1458 = vmatprep.subr.mxu0 0.0
    %1459 = vmatpush1.msra.mxu0 0.0
    %1460 = vmatprep.subr.mxu0 0.0
    %1461 = vmatpush1.msra.mxu0 0.0
    %1462 = vmatprep.subr.mxu0 0.0
    %1463 = vmatpush1.msra.mxu0 0.0
    %1464 = vmatprep.subr.mxu0 0.0
    %1465 = vmatpush1.msra.mxu0 0.0
    %1466 = vmatprep.subr.mxu0 0.0
    %1467 = vmatpush1.msra.mxu0 0.0
    %1468 = vmatprep.subr.mxu0 0.0
    %1469 = vmatpush1.msra.mxu0 0.0
    %1470 = vmatprep.subr.mxu0 0.0
    %1471 = vmatpush1.msra.mxu0 0.0
    %1472 = vmatprep.subr.mxu0 0.0
    %1473 = vmatpush1.msra.mxu0 0.0
    %1474 = vmatprep.subr.mxu0 0.0
    %1475 = vmatpush1.msra.mxu0 0.0
    %1476 = vmatprep.subr.mxu0 0.0
    %1477 = vmatpush1.msra.mxu0 0.0
    %1478 = vmatprep.subr.mxu0 0.0
    %1479 = vmatpush1.msra.mxu0 0.0
    %1480 = vmatprep.subr.mxu0 0.0
    %1481 = vmatpush1.msra.mxu0 0.0
    %1482 = vmatprep.subr.mxu0 0.0
    %1483 = vmatpush1.msra.mxu0 0.0
    %1484 = vmatprep.subr.mxu0 0.0
    %1485 = vmatpush1.msra.mxu0 0.0
    %1486 = vmatprep.subr.mxu0 0.0
    %1487 = vmatpush1.msra.mxu0 0.0
    %1488 = vmatprep.subr.mxu0 0.0
    %1489 = vmatpush1.msra.mxu0 0.0
    %1490 = vmatprep.subr.mxu0 0.0
    %1491 = vmatpush1.msra.mxu0 0.0
    %1492 = vmatprep.subr.mxu0 0.0
    %1493 = vmatpush1.msra.mxu0 0.0
    %1494 = vmatprep.subr.mxu0 0.0
    %1495 = vmatpush1.msra.mxu0 0.0
    %1496 = vmatprep.mubr.f32.mxu0 0.0
    %1497 = vmatmul.mubr.f32.gmra.mrb[0].mxu0 %v1430
    %v1498 = vpop.f32.mrb[0].mxu0
    %v1499 = vadd.f32 0.0, %v1498
    %v1500 = vpop.f32.mrb[0].mxu0
    %1501 = vdwg.mxu0
    %v1503 = vsel %vm1136, %v1133, 0
    %1505 = vmatprep.subr.mxu0 0.0
    %1506 = vmatpush1.msra.mxu0 %v127
    %1507 = vmatprep.subr.mxu0 0.0
    %1508 = vmatpush1.msra.mxu0 0.0
    %1509 = vmatprep.subr.mxu0 0.0
    %1510 = vmatpush1.msra.mxu0 0.0
    %1511 = vmatprep.subr.mxu0 0.0
    %1512 = vmatpush1.msra.mxu0 0.0
    %1513 = vmatprep.subr.mxu0 0.0
    %1514 = vmatpush1.msra.mxu0 0.0
    %1515 = vmatprep.subr.mxu0 0.0
    %1516 = vmatpush1.msra.mxu0 0.0
    %1517 = vmatprep.subr.mxu0 0.0
    %1518 = vmatpush1.msra.mxu0 0.0
    %1519 = vmatprep.subr.mxu0 0.0
    %1520 = vmatpush1.msra.mxu0 0.0
    %1521 = vmatprep.subr.mxu0 0.0
    %1522 = vmatpush1.msra.mxu0 0.0
    %1523 = vmatprep.subr.mxu0 0.0
    %1524 = vmatpush1.msra.mxu0 0.0
    %1525 = vmatprep.subr.mxu0 0.0
    %1526 = vmatpush1.msra.mxu0 0.0
    %1527 = vmatprep.subr.mxu0 0.0
    %1528 = vmatpush1.msra.mxu0 0.0
    %1529 = vmatprep.subr.mxu0 0.0
    %1530 = vmatpush1.msra.mxu0 0.0
    %1531 = vmatprep.subr.mxu0 0.0
    %1532 = vmatpush1.msra.mxu0 0.0
    %1533 = vmatprep.subr.mxu0 0.0
    %1534 = vmatpush1.msra.mxu0 0.0
    %1535 = vmatprep.subr.mxu0 0.0
    %1536 = vmatpush1.msra.mxu0 0.0
    %1537 = vmatprep.subr.mxu0 0.0
    %1538 = vmatpush1.msra.mxu0 0.0
    %1539 = vmatprep.subr.mxu0 0.0
    %1540 = vmatpush1.msra.mxu0 0.0
    %1541 = vmatprep.subr.mxu0 0.0
    %1542 = vmatpush1.msra.mxu0 0.0
    %1543 = vmatprep.subr.mxu0 0.0
    %1544 = vmatpush1.msra.mxu0 0.0
    %1545 = vmatprep.subr.mxu0 0.0
    %1546 = vmatpush1.msra.mxu0 0.0
    %1547 = vmatprep.subr.mxu0 0.0
    %1548 = vmatpush1.msra.mxu0 0.0
    %1549 = vmatprep.subr.mxu0 0.0
    %1550 = vmatpush1.msra.mxu0 0.0
    %1551 = vmatprep.subr.mxu0 0.0
    %1552 = vmatpush1.msra.mxu0 0.0
    %1553 = vmatprep.subr.mxu0 0.0
    %1554 = vmatpush1.msra.mxu0 0.0
    %1555 = vmatprep.subr.mxu0 0.0
    %1556 = vmatpush1.msra.mxu0 0.0
    %1557 = vmatprep.subr.mxu0 0.0
    %1558 = vmatpush1.msra.mxu0 0.0
    %1559 = vmatprep.subr.mxu0 0.0
    %1560 = vmatpush1.msra.mxu0 0.0
    %1561 = vmatprep.subr.mxu0 0.0
    %1562 = vmatpush1.msra.mxu0 0.0
    %1563 = vmatprep.subr.mxu0 0.0
    %1564 = vmatpush1.msra.mxu0 0.0
    %1565 = vmatprep.subr.mxu0 0.0
    %1566 = vmatpush1.msra.mxu0 0.0
    %1567 = vmatprep.subr.mxu0 0.0
    %1568 = vmatpush1.msra.mxu0 0.0
    %1569 = vmatprep.mubr.f32.mxu0 0.0
    %1570 = vmatmul.mubr.f32.gmra.mrb[0].mxu0 %v1503
    %v1571 = vpop.f32.mrb[0].mxu0
    %v1572 = vadd.f32 0.0, %v1571
    %v1573 = vpop.f32.mrb[0].mxu0
    %1574 = vdwg.mxu0
    %v1576 = vsel %vm1136, %v1134, 0
    %1578 = vmatprep.subr.mxu0 0.0
    %1579 = vmatpush1.msra.mxu0 %v128
    %1580 = vmatprep.subr.mxu0 0.0
    %1581 = vmatpush1.msra.mxu0 0.0
    %1582 = vmatprep.subr.mxu0 0.0
    %1583 = vmatpush1.msra.mxu0 0.0
    %1584 = vmatprep.subr.mxu0 0.0
    %1585 = vmatpush1.msra.mxu0 0.0
    %1586 = vmatprep.subr.mxu0 0.0
    %1587 = vmatpush1.msra.mxu0 0.0
    %1588 = vmatprep.subr.mxu0 0.0
    %1589 = vmatpush1.msra.mxu0 0.0
    %1590 = vmatprep.subr.mxu0 0.0
    %1591 = vmatpush1.msra.mxu0 0.0
    %1592 = vmatprep.subr.mxu0 0.0
    %1593 = vmatpush1.msra.mxu0 0.0
    %1594 = vmatprep.subr.mxu0 0.0
    %1595 = vmatpush1.msra.mxu0 0.0
    %1596 = vmatprep.subr.mxu0 0.0
    %1597 = vmatpush1.msra.mxu0 0.0
    %1598 = vmatprep.subr.mxu0 0.0
    %1599 = vmatpush1.msra.mxu0 0.0
    %1600 = vmatprep.subr.mxu0 0.0
    %1601 = vmatpush1.msra.mxu0 0.0
    %1602 = vmatprep.subr.mxu0 0.0
    %1603 = vmatpush1.msra.mxu0 0.0
    %1604 = vmatprep.subr.mxu0 0.0
    %1605 = vmatpush1.msra.mxu0 0.0
    %1606 = vmatprep.subr.mxu0 0.0
    %1607 = vmatpush1.msra.mxu0 0.0
    %1608 = vmatprep.subr.mxu0 0.0
    %1609 = vmatpush1.msra.mxu0 0.0
    %1610 = vmatprep.subr.mxu0 0.0
    %1611 = vmatpush1.msra.mxu0 0.0
    %1612 = vmatprep.subr.mxu0 0.0
    %1613 = vmatpush1.msra.mxu0 0.0
    %1614 = vmatprep.subr.mxu0 0.0
    %1615 = vmatpush1.msra.mxu0 0.0
    %1616 = vmatprep.subr.mxu0 0.0
    %1617 = vmatpush1.msra.mxu0 0.0
    %1618 = vmatprep.subr.mxu0 0.0
    %1619 = vmatpush1.msra.mxu0 0.0
    %1620 = vmatprep.subr.mxu0 0.0
    %1621 = vmatpush1.msra.mxu0 0.0
    %1622 = vmatprep.subr.mxu0 0.0
    %1623 = vmatpush1.msra.mxu0 0.0
    %1624 = vmatprep.subr.mxu0 0.0
    %1625 = vmatpush1.msra.mxu0 0.0
    %1626 = vmatprep.subr.mxu0 0.0
    %1627 = vmatpush1.msra.mxu0 0.0
    %1628 = vmatprep.subr.mxu0 0.0
    %1629 = vmatpush1.msra.mxu0 0.0
    %1630 = vmatprep.subr.mxu0 0.0
    %1631 = vmatpush1.msra.mxu0 0.0
    %1632 = vmatprep.subr.mxu0 0.0
    %1633 = vmatpush1.msra.mxu0 0.0
    %1634 = vmatprep.subr.mxu0 0.0
    %1635 = vmatpush1.msra.mxu0 0.0
    %1636 = vmatprep.subr.mxu0 0.0
    %1637 = vmatpush1.msra.mxu0 0.0
    %1638 = vmatprep.subr.mxu0 0.0
    %1639 = vmatpush1.msra.mxu0 0.0
    %1640 = vmatprep.subr.mxu0 0.0
    %1641 = vmatpush1.msra.mxu0 0.0
    %1642 = vmatprep.mubr.f32.mxu0 0.0
    %1643 = vmatmul.mubr.f32.gmra.mrb[0].mxu0 %v1576
    %v1644 = vpop.f32.mrb[0].mxu0
    %v1645 = vadd.f32 0.0, %v1644
    %v1646 = vpop.f32.mrb[0].mxu0
    %1647 = vdwg.mxu0
    %v1649 = vsel %vm1136, %v1135, 0
    %1651 = vmatprep.subr.mxu0 0.0
    %1652 = vmatpush1.msra.mxu0 %v129
    %1653 = vmatprep.subr.mxu0 0.0
    %1654 = vmatpush1.msra.mxu0 0.0
    %1655 = vmatprep.subr.mxu0 0.0
    %1656 = vmatpush1.msra.mxu0 0.0
    %1657 = vmatprep.subr.mxu0 0.0
    %1658 = vmatpush1.msra.mxu0 0.0
    %1659 = vmatprep.subr.mxu0 0.0
    %1660 = vmatpush1.msra.mxu0 0.0
    %1661 = vmatprep.subr.mxu0 0.0
    %1662 = vmatpush1.msra.mxu0 0.0
    %1663 = vmatprep.subr.mxu0 0.0
    %1664 = vmatpush1.msra.mxu0 0.0
    %1665 = vmatprep.subr.mxu0 0.0
    %1666 = vmatpush1.msra.mxu0 0.0
    %1667 = vmatprep.subr.mxu0 0.0
    %1668 = vmatpush1.msra.mxu0 0.0
    %1669 = vmatprep.subr.mxu0 0.0
    %1670 = vmatpush1.msra.mxu0 0.0
    %1671 = vmatprep.subr.mxu0 0.0
    %1672 = vmatpush1.msra.mxu0 0.0
    %1673 = vmatprep.subr.mxu0 0.0
    %1674 = vmatpush1.msra.mxu0 0.0
    %1675 = vmatprep.subr.mxu0 0.0
    %1676 = vmatpush1.msra.mxu0 0.0
    %1677 = vmatprep.subr.mxu0 0.0
    %1678 = vmatpush1.msra.mxu0 0.0
    %1679 = vmatprep.subr.mxu0 0.0
    %1680 = vmatpush1.msra.mxu0 0.0
    %1681 = vmatprep.subr.mxu0 0.0
    %1682 = vmatpush1.msra.mxu0 0.0
    %1683 = vmatprep.subr.mxu0 0.0
    %1684 = vmatpush1.msra.mxu0 0.0
    %1685 = vmatprep.subr.mxu0 0.0
    %1686 = vmatpush1.msra.mxu0 0.0
    %1687 = vmatprep.subr.mxu0 0.0
    %1688 = vmatpush1.msra.mxu0 0.0
    %1689 = vmatprep.subr.mxu0 0.0
    %1690 = vmatpush1.msra.mxu0 0.0
    %1691 = vmatprep.subr.mxu0 0.0
    %1692 = vmatpush1.msra.mxu0 0.0
    %1693 = vmatprep.subr.mxu0 0.0
    %1694 = vmatpush1.msra.mxu0 0.0
    %1695 = vmatprep.subr.mxu0 0.0
    %1696 = vmatpush1.msra.mxu0 0.0
    %1697 = vmatprep.subr.mxu0 0.0
    %1698 = vmatpush1.msra.mxu0 0.0
    %1699 = vmatprep.subr.mxu0 0.0
    %1700 = vmatpush1.msra.mxu0 0.0
    %1701 = vmatprep.subr.mxu0 0.0
    %1702 = vmatpush1.msra.mxu0 0.0
    %1703 = vmatprep.subr.mxu0 0.0
    %1704 = vmatpush1.msra.mxu0 0.0
    %1705 = vmatprep.subr.mxu0 0.0
    %1706 = vmatpush1.msra.mxu0 0.0
    %1707 = vmatprep.subr.mxu0 0.0
    %1708 = vmatpush1.msra.mxu0 0.0
    %1709 = vmatprep.subr.mxu0 0.0
    %1710 = vmatpush1.msra.mxu0 0.0
    %1711 = vmatprep.subr.mxu0 0.0
    %1712 = vmatpush1.msra.mxu0 0.0
    %1713 = vmatprep.subr.mxu0 0.0
    %1714 = vmatpush1.msra.mxu0 0.0
    %1715 = vmatprep.mubr.f32.mxu0 0.0
    %1716 = vmatmul.mubr.f32.gmra.mrb[0].mxu0 %v1649
    %v1717 = vpop.f32.mrb[0].mxu0
    %v1718 = vadd.f32 0.0, %v1717
    %v1719 = vpop.f32.mrb[0].mxu0
    %1720 = vdwg.mxu0
    %v1729 = vrot.slane %v1280, 7
    %vm1730 = vcmask 1041409
    %v1731 = vsel %vm1730, %v1729, %v1207
    %v1732 = vrot.slane %v1353, 6
    %vm1733 = vcmask 1042434
    %v1734 = vsel %vm1733, %v1732, %v1731
    %v1735 = vrot.slane %v1426, 5
    %vm1736 = vcmask 1043459
    %v1737 = vsel %vm1736, %v1735, %v1734
    %v1738 = vrot.slane %v1499, 4
    %vm1739 = vcmask 1044484
    %v1740 = vsel %vm1739, %v1738, %v1737
    %v1741 = vrot.slane %v1572, 3
    %vm1742 = vcmask 1045509
    %v1743 = vsel %vm1742, %v1741, %v1740
    %v1744 = vrot.slane %v1645, 2
    %vm1745 = vcmask 1046534
    %v1746 = vsel %vm1745, %v1744, %v1743
    %v1747 = vrot.slane %v1718, 1
    %vm1748 = vcmask 1047559
    %v1749 = vsel %vm1748, %v1747, %v1746
    %1750 = vrot.lane.b32.xlu0 %v1749, 16
    %v1751 = vpop.permute.xlu0 %1750
    %vm1753 = vcmask 130048
    %v1754 = vsel %vm1753, %v120, %v1751
    %v1755 = vld [vmem:[%s7] sm:$0xff]
    %v1756 = vld [vmem:[%s7 + $0x8] sm:$0xff]
    %v1757 = vld [vmem:[%s7 + $0x10] sm:$0xff]
    %v1758 = vld [vmem:[%s7 + $0x18] sm:$0xff]
    %v1759 = vld [vmem:[%s7 + $0x20] sm:$0xff]
    %v1760 = vld [vmem:[%s7 + $0x28] sm:$0xff]
    %v1761 = vld [vmem:[%s7 + $0x30] sm:$0xff]
    %v1762 = vld [vmem:[%s7 + $0x38] sm:$0xff]
    %v1763 = vld [vmem:[%s7 + $0x40] sm:$0xff]
    %v1764 = vld [vmem:[%s7 + $0x48] sm:$0xff]
    %v1765 = vld [vmem:[#allocation7] sm:$0x1]
    %v1767 = vlaneseq
    %v1768 = vshrl.u32 %v1767, 7
    %v1769 = vsub.s32 0, %v1768
    %v1770 = vrot.slane %v1765, %v1769
    %vm1772 = vcmask 654336
    %v1774 = vsel %vm1772, %v1754, 0
    %1776 = vmatprep.subr.mxu0 0.0
    %1777 = vmatpush1.msra.mxu0 %v1755
    %1778 = vmatprep.subr.mxu0 0.0
    %1779 = vmatpush1.msra.mxu0 %v1756
    %1780 = vmatprep.subr.mxu0 0.0
    %1781 = vmatpush1.msra.mxu0 %v1757
    %1782 = vmatprep.subr.mxu0 0.0
    %1783 = vmatpush1.msra.mxu0 %v1758
    %1784 = vmatprep.subr.mxu0 0.0
    %1785 = vmatpush1.msra.mxu0 %v1759
    %1786 = vmatprep.subr.mxu0 0.0
    %1787 = vmatpush1.msra.mxu0 %v1760
    %1788 = vmatprep.subr.mxu0 0.0
    %1789 = vmatpush1.msra.mxu0 %v1761
    %1790 = vmatprep.subr.mxu0 0.0
    %1791 = vmatpush1.msra.mxu0 %v1762
    %1792 = vmatprep.subr.mxu0 0.0
    %1793 = vmatpush1.msra.mxu0 %v1763
    %1794 = vmatprep.subr.mxu0 0.0
    %1795 = vmatpush1.msra.mxu0 %v1764
    %1796 = vmatprep.subr.mxu0 0.0
    %1797 = vmatpush1.msra.mxu0 0.0
    %1798 = vmatprep.subr.mxu0 0.0
    %1799 = vmatpush1.msra.mxu0 0.0
    %1800 = vmatprep.subr.mxu0 0.0
    %1801 = vmatpush1.msra.mxu0 0.0
    %1802 = vmatprep.subr.mxu0 0.0
    %1803 = vmatpush1.msra.mxu0 0.0
    %1804 = vmatprep.subr.mxu0 0.0
    %1805 = vmatpush1.msra.mxu0 0.0
    %1806 = vmatprep.subr.mxu0 0.0
    %1807 = vmatpush1.msra.mxu0 0.0
    %1808 = vmatprep.subr.mxu0 0.0
    %1809 = vmatpush1.msra.mxu0 0.0
    %1810 = vmatprep.subr.mxu0 0.0
    %1811 = vmatpush1.msra.mxu0 0.0
    %1812 = vmatprep.subr.mxu0 0.0
    %1813 = vmatpush1.msra.mxu0 0.0
    %1814 = vmatprep.subr.mxu0 0.0
    %1815 = vmatpush1.msra.mxu0 0.0
    %1816 = vmatprep.subr.mxu0 0.0
    %1817 = vmatpush1.msra.mxu0 0.0
    %1818 = vmatprep.subr.mxu0 0.0
    %1819 = vmatpush1.msra.mxu0 0.0
    %1820 = vmatprep.subr.mxu0 0.0
    %1821 = vmatpush1.msra.mxu0 0.0
    %1822 = vmatprep.subr.mxu0 0.0
    %1823 = vmatpush1.msra.mxu0 0.0
    %1824 = vmatprep.subr.mxu0 0.0
    %1825 = vmatpush1.msra.mxu0 0.0
    %1826 = vmatprep.subr.mxu0 0.0
    %1827 = vmatpush1.msra.mxu0 0.0
    %1828 = vmatprep.subr.mxu0 0.0
    %1829 = vmatpush1.msra.mxu0 0.0
    %1830 = vmatprep.subr.mxu0 0.0
    %1831 = vmatpush1.msra.mxu0 0.0
    %1832 = vmatprep.subr.mxu0 0.0
    %1833 = vmatpush1.msra.mxu0 0.0
    %1834 = vmatprep.subr.mxu0 0.0
    %1835 = vmatpush1.msra.mxu0 0.0
    %1836 = vmatprep.subr.mxu0 0.0
    %1837 = vmatpush1.msra.mxu0 0.0
    %1838 = vmatprep.subr.mxu0 0.0
    %1839 = vmatpush1.msra.mxu0 0.0
    %1840 = vmatprep.mubr.f32.mxu0 0.0
    %1841 = vmatmul.mubr.f32.gmra.mrb[0].mxu0 %v1774
    %v1842 = vpop.f32.mrb[0].mxu0
    %v1843 = vadd.f32 %v1770, %v1842
    %v1844 = vpop.f32.mrb[0].mxu0
    %1845 = vdwg.mxu0
    %v1846 = vld [vmem:[#allocation8] sm:$0xff]
    %v1847 = vld [vmem:[#allocation8 + $0x8] sm:$0xff]
    %v1848 = vld [vmem:[#allocation8 + $0x10] sm:$0xff]
    %v1849 = vld [vmem:[#allocation8 + $0x18] sm:$0xff]
    %v1850 = vld [vmem:[#allocation10] sm:$0x1]
    %v1852 = vlaneseq
    %v1853 = vshrl.u32 %v1852, 7
    %v1854 = vsub.s32 0, %v1853
    %v1855 = vrot.slane %v1850, %v1854
    %1857 = vmatprep.subr.mxu0 0.0
    %1858 = vmatpush1.msra.mxu0 %v1846
    %1859 = vmatprep.subr.mxu0 0.0
    %1860 = vmatpush1.msra.mxu0 %v1847
    %1861 = vmatprep.subr.mxu0 0.0
    %1862 = vmatpush1.msra.mxu0 %v1848
    %1863 = vmatprep.subr.mxu0 0.0
    %1864 = vmatpush1.msra.mxu0 %v1849
    %1865 = vmatprep.subr.mxu0 0.0
    %1866 = vmatpush1.msra.mxu0 0.0
    %1867 = vmatprep.subr.mxu0 0.0
    %1868 = vmatpush1.msra.mxu0 0.0
    %1869 = vmatprep.subr.mxu0 0.0
    %1870 = vmatpush1.msra.mxu0 0.0
    %1871 = vmatprep.subr.mxu0 0.0
    %1872 = vmatpush1.msra.mxu0 0.0
    %1873 = vmatprep.subr.mxu0 0.0
    %1874 = vmatpush1.msra.mxu0 0.0
    %1875 = vmatprep.subr.mxu0 0.0
    %1876 = vmatpush1.msra.mxu0 0.0
    %1877 = vmatprep.subr.mxu0 0.0
    %1878 = vmatpush1.msra.mxu0 0.0
    %1879 = vmatprep.subr.mxu0 0.0
    %1880 = vmatpush1.msra.mxu0 0.0
    %1881 = vmatprep.subr.mxu0 0.0
    %1882 = vmatpush1.msra.mxu0 0.0
    %1883 = vmatprep.subr.mxu0 0.0
    %1884 = vmatpush1.msra.mxu0 0.0
    %1885 = vmatprep.subr.mxu0 0.0
    %1886 = vmatpush1.msra.mxu0 0.0
    %1887 = vmatprep.subr.mxu0 0.0
    %1888 = vmatpush1.msra.mxu0 0.0
    %1889 = vmatprep.subr.mxu0 0.0
    %1890 = vmatpush1.msra.mxu0 0.0
    %1891 = vmatprep.subr.mxu0 0.0
    %1892 = vmatpush1.msra.mxu0 0.0
    %1893 = vmatprep.subr.mxu0 0.0
    %1894 = vmatpush1.msra.mxu0 0.0
    %1895 = vmatprep.subr.mxu0 0.0
    %1896 = vmatpush1.msra.mxu0 0.0
    %1897 = vmatprep.subr.mxu0 0.0
    %1898 = vmatpush1.msra.mxu0 0.0
    %1899 = vmatprep.subr.mxu0 0.0
    %1900 = vmatpush1.msra.mxu0 0.0
    %1901 = vmatprep.subr.mxu0 0.0
    %1902 = vmatpush1.msra.mxu0 0.0
    %1903 = vmatprep.subr.mxu0 0.0
    %1904 = vmatpush1.msra.mxu0 0.0
    %1905 = vmatprep.subr.mxu0 0.0
    %1906 = vmatpush1.msra.mxu0 0.0
    %1907 = vmatprep.subr.mxu0 0.0
    %1908 = vmatpush1.msra.mxu0 0.0
    %1909 = vmatprep.subr.mxu0 0.0
    %1910 = vmatpush1.msra.mxu0 0.0
    %1911 = vmatprep.subr.mxu0 0.0
    %1912 = vmatpush1.msra.mxu0 0.0
    %1913 = vmatprep.subr.mxu0 0.0
    %1914 = vmatpush1.msra.mxu0 0.0
    %1915 = vmatprep.subr.mxu0 0.0
    %1916 = vmatpush1.msra.mxu0 0.0
    %1917 = vmatprep.subr.mxu0 0.0
    %1918 = vmatpush1.msra.mxu0 0.0
    %1919 = vmatprep.subr.mxu0 0.0
    %1920 = vmatpush1.msra.mxu0 0.0
    %1921 = vmatprep.mubr.f32.mxu0 0.0
    %1922 = vmatmul.mubr.f32.gmra.mrb[0].mxu0 %v281
    %v1923 = vpop.f32.mrb[0].mxu0
    %v1924 = vadd.f32 %v1855, %v1923
    %v1925 = vpop.f32.mrb[0].mxu0
    %1926 = vdwg.mxu0
    %v1927 = vadd.f32 %v1843, %v1924
    %v1928 = vxor.u32 %v1927, 2147483648
    %v1929 = vmul.f32 %v1928, 1.442695
    %v1930 = vpow.pop %v1929
    %v1931 = vadd.f32 %v1930, 1.0
    %v1932 = vrcp.pop %v1931
    %v1933 = vmul.f32 1.0, %v1932
    %1935 = vrot.lane.b32.xlu0 %v1924, 64
    %v1936 = vpop.permute.xlu0 %1935
    %v1938 = vmul.f32 %v1933, %v1936
    %1940 = vrot.lane.b32.xlu0 %v1938, 64
    %v1941 = vpop.permute.xlu0 %1940
    %v1943 = vadd.f32 %v1843, %v1941
    %v1944 = vtanh.pop %v1943
    %v1945 = vsub.f32 1.0, %v1933
    %1947 = vrot.lane.b32.xlu0 %v1944, 96
    %v1948 = vpop.permute.xlu0 %1947
    %v1950 = vmul.f32 %v1945, %v1948
    %1951 = vrot.lane.b32.xlu0 %v121, 32
    %v1952 = vpop.permute.xlu0 %1951
    %v1954 = vmul.f32 %v1933, %v1952
    %v1955 = vadd.f32 %v1950, %v1954
    %1957 = vrot.lane.b32.xlu0 %v1955, 96
    %v1958 = vpop.permute.xlu0 %1957
    %1960 = vst.msk [vmem:[#allocation14] sm:$0xff] %vm279, %v1958
    %1961 = vrot.lane.b32.xlu0 %v1749, 32
    %v1962 = vpop.permute.xlu0 %1961
    %1965 = vrot.lane.b32.xlu0 %v120, 96
    %v1966 = vpop.permute.xlu0 %1965
    %v1968 = vsel %vm279, %v1958, %v1962
    %vm1969 = vcmask 785408
    %v1970 = vsel %vm1969, %v1968, %v1966
    %v1971 = vld [vmem:[%s11] sm:$0xff]
    %v1972 = vld [vmem:[%s11 + $0x8] sm:$0xff]
    %v1973 = vld [vmem:[%s11 + $0x10] sm:$0xff]
    %v1974 = vld [vmem:[%s11 + $0x18] sm:$0xff]
    %v1975 = vld [vmem:[%s11 + $0x20] sm:$0xff]
    %v1976 = vld [vmem:[%s11 + $0x28] sm:$0xff]
    %v1977 = vld [vmem:[%s11 + $0x30] sm:$0xff]
    %v1978 = vld [vmem:[%s11 + $0x38] sm:$0xff]
    %v1979 = vld [vmem:[%s11 + $0x40] sm:$0xff]
    %v1980 = vld [vmem:[%s11 + $0x48] sm:$0xff]
    %v1981 = vld [vmem:[%s11 + $0x50] sm:$0xff]
    %v1982 = vld [vmem:[%s11 + $0x58] sm:$0xff]
    %v1983 = vld [vmem:[%s11 + $0x60] sm:$0xff]
    %v1984 = vld [vmem:[%s11 + $0x68] sm:$0xff]
    %v1985 = vld [vmem:[#allocation11] sm:$0x1]
    %v1987 = vlaneseq
    %v1988 = vshrl.u32 %v1987, 7
    %v1989 = vsub.s32 0, %v1988
    %v1990 = vrot.slane %v1985, %v1989
    %vm1992 = vcmask 916480
    %v1994 = vsel %vm1992, %v1970, 0
    %1996 = vmatprep.subr.mxu0 0.0
    %1997 = vmatpush1.msra.mxu0 %v1971
    %1998 = vmatprep.subr.mxu0 0.0
    %1999 = vmatpush1.msra.mxu0 %v1972
    %2000 = vmatprep.subr.mxu0 0.0
    %2001 = vmatpush1.msra.mxu0 %v1973
    %2002 = vmatprep.subr.mxu0 0.0
    %2003 = vmatpush1.msra.mxu0 %v1974
    %2004 = vmatprep.subr.mxu0 0.0
    %2005 = vmatpush1.msra.mxu0 %v1975
    %2006 = vmatprep.subr.mxu0 0.0
    %2007 = vmatpush1.msra.mxu0 %v1976
    %2008 = vmatprep.subr.mxu0 0.0
    %2009 = vmatpush1.msra.mxu0 %v1977
    %2010 = vmatprep.subr.mxu0 0.0
    %2011 = vmatpush1.msra.mxu0 %v1978
    %2012 = vmatprep.subr.mxu0 0.0
    %2013 = vmatpush1.msra.mxu0 %v1979
    %2014 = vmatprep.subr.mxu0 0.0
    %2015 = vmatpush1.msra.mxu0 %v1980
    %2016 = vmatprep.subr.mxu0 0.0
    %2017 = vmatpush1.msra.mxu0 %v1981
    %2018 = vmatprep.subr.mxu0 0.0
    %2019 = vmatpush1.msra.mxu0 %v1982
    %2020 = vmatprep.subr.mxu0 0.0
    %2021 = vmatpush1.msra.mxu0 %v1983
    %2022 = vmatprep.subr.mxu0 0.0
    %2023 = vmatpush1.msra.mxu0 %v1984
    %2024 = vmatprep.subr.mxu0 0.0
    %2025 = vmatpush1.msra.mxu0 0.0
    %2026 = vmatprep.subr.mxu0 0.0
    %2027 = vmatpush1.msra.mxu0 0.0
    %2028 = vmatprep.subr.mxu0 0.0
    %2029 = vmatpush1.msra.mxu0 0.0
    %2030 = vmatprep.subr.mxu0 0.0
    %2031 = vmatpush1.msra.mxu0 0.0
    %2032 = vmatprep.subr.mxu0 0.0
    %2033 = vmatpush1.msra.mxu0 0.0
    %2034 = vmatprep.subr.mxu0 0.0
    %2035 = vmatpush1.msra.mxu0 0.0
    %2036 = vmatprep.subr.mxu0 0.0
    %2037 = vmatpush1.msra.mxu0 0.0
    %2038 = vmatprep.subr.mxu0 0.0
    %2039 = vmatpush1.msra.mxu0 0.0
    %2040 = vmatprep.subr.mxu0 0.0
    %2041 = vmatpush1.msra.mxu0 0.0
    %2042 = vmatprep.subr.mxu0 0.0
    %2043 = vmatpush1.msra.mxu0 0.0
    %2044 = vmatprep.subr.mxu0 0.0
    %2045 = vmatpush1.msra.mxu0 0.0
    %2046 = vmatprep.subr.mxu0 0.0
    %2047 = vmatpush1.msra.mxu0 0.0
    %2048 = vmatprep.subr.mxu0 0.0
    %2049 = vmatpush1.msra.mxu0 0.0
    %2050 = vmatprep.subr.mxu0 0.0
    %2051 = vmatpush1.msra.mxu0 0.0
    %2052 = vmatprep.subr.mxu0 0.0
    %2053 = vmatpush1.msra.mxu0 0.0
    %2054 = vmatprep.subr.mxu0 0.0
    %2055 = vmatpush1.msra.mxu0 0.0
    %2056 = vmatprep.subr.mxu0 0.0
    %2057 = vmatpush1.msra.mxu0 0.0
    %2058 = vmatprep.subr.mxu0 0.0
    %2059 = vmatpush1.msra.mxu0 0.0
    %2060 = vmatprep.mubr.f32.mxu0 0.0
    %2061 = vmatmul.mubr.f32.gmra.mrb[0].mxu0 %v1994
    %v2062 = vpop.f32.mrb[0].mxu0
    %v2063 = vadd.f32 %v1990, %v2062
    %v2064 = vpop.f32.mrb[0].mxu0
    %2065 = vdwg.mxu0
    %2066 = vst [vmem:[#allocation13] sm:$0xff] %v2063
    // Predicated region
    $region78: #{decoder_with_attention_step.1} parent=1 // pred_check
      _
    $region79: #{decoder_with_attention_step.1} parent=1 // pred_check_branch
      %2068 = sbr.rel (0) target = $region81
    $region80: #{decoder_with_attention_step.1} parent=1 // pred_region
      %s2070 = ssub.s32 128, 128
      %2071 = vsyncadd [#allocation4], %s2070
      %s2073 = sshll.u32 [#allocation13], 4
      %s2074 = int_to_ptr.vmem [resolvable:$true] %s2073
      %2076 = dma.vmem_to_hbm [thread:$0]  %s2074, 128, %s13, [#allocation4]
    $region81: #{decoder_with_attention_step.1} parent=1 // pred_fallthru
      _
    // Predicated region
    $region82: #{decoder_with_attention_step.1} parent=1 // pred_check
      _
    $region83: #{decoder_with_attention_step.1} parent=1 // pred_check_branch
      %2078 = sbr.rel (0) target = $region85
    $region84: #{decoder_with_attention_step.1} parent=1 // pred_region
      %s2080 = ssub.s32 128, 128
      %2081 = vsyncadd [#allocation15], %s2080
      %s2083 = sshll.u32 [#allocation14], 4
      %s2084 = int_to_ptr.vmem [resolvable:$true] %s2083
      %2086 = dma.vmem_to_hbm [thread:$0]  %s2084, 128, %s14, [#allocation15]
    $region85: #{decoder_with_attention_step.1} parent=1 // pred_fallthru
      _
    // Predicated region
    $region86: #{decoder_with_attention_step.1} parent=1 // pred_check
      _
    $region87: #{decoder_with_attention_step.1} parent=1 // pred_check_branch
      %2088 = sbr.rel (0) target = $region89
    $region88: #{decoder_with_attention_step.1} parent=1 // pred_region
      %2089 = dma.done [#allocation4], 128
    $region89: #{decoder_with_attention_step.1} parent=1 // pred_fallthru
      _
    // Predicated region
    $region90: #{decoder_with_attention_step.1} parent=1 // pred_check
      _
    $region91: #{decoder_with_attention_step.1} parent=1 // pred_check_branch
      %2091 = sbr.rel (0) target = $region93
    $region92: #{decoder_with_attention_step.1} parent=1 // pred_region
      %2092 = dma.done [#allocation15], 128
    $region93: #{decoder_with_attention_step.1} parent=1 // pred_fallthru
      _
    %2093 = vsyncpa [#allocation3], 1
    %2094 = vsyncpa [#allocation6], 1
    %2095 = vsyncpa [#allocation9], 1
    %2096 = vsyncpa [#allocation12], 1
    %2097 = vsyncpa [#allocation4], 1
    %2098 = vsyncpa [#allocation15], 1

</llo_original>
